<compile_context>
chip_gen: v7x
topology: tpu7x:2x2x1
jax: 0.10.0
libtpu: 0.0.40
codegen_flags: <defaults>
</compile_context>

<pallas_src>
import functools

import jax
import jax.numpy as jnp
from jax.experimental import pallas as pl
from jax.experimental.pallas import tpu as pltpu

EPS = 1e-5
LANE = 128                                # pad all feature dims to a multiple of this
TILE_ROWS = 128                           # A stripe height / z row-tile / output row-tile
A_RESIDENT_MAX_BYTES = 12 * 1024 * 1024   # keep bf16 A_hat VMEM-resident below this


# ----------------------------- padding helpers ------------------------------

def _round_up(x, m):
    return ((x + m - 1) // m) * m


def _pad2(a, rows, cols):
    return jnp.pad(a, ((0, rows - a.shape[0]), (0, cols - a.shape[1])))


# ----------------------------- Pallas kernel --------------------------------

def _gnn_fused_kernel(
    x_ref, a_ref, w_pre_ref, g_pre_ref, b_pre_ref,
    w_mp_ref, g_mp_ref, be_mp_ref, w_head_ref, b_head_ref,
    out_ref, h_scr, z_scr, s1_scr, s2_scr,
    *, n_real, layers_mp, tile_rows, a_resident,
):
    l = pl.program_id(0)          # 0 .. layers_mp-1 = MP layers; layers_mp = head phase
    r = pl.program_id(1)          # row-tile index
    inv_n = 1.0 / float(n_real)
    is_mp = l < layers_mp

    def bn_scale_shift(s1, s2, gamma, beta):
        # BatchNorm1d (training-mode batch stats, biased variance) as scale/shift.
        mean = s1 * inv_n
        var = jnp.maximum(s2 * inv_n - mean * mean, 0.0)
        inv = jax.lax.rsqrt(var + EPS)
        scale = inv * gamma
        return scale, beta - mean * scale

    # ------------------------------------------------------------------------
    # Layer boundary (r == 0 of an MP layer): build the fused layer input
    #   h_scr <- act(BN(Z_{l-1})) @ W_l
    # so the stripe loop below is a single large-K matmul per A stripe.
    # ------------------------------------------------------------------------
    @pl.when(jnp.logical_and(r == 0, is_mp))
    def _prepare_layer():
        def fuse_store(h_f32):
            h_scr[...] = jnp.dot(
                h_f32.astype(jnp.bfloat16), w_mp_ref[l],
                preferred_element_type=jnp.float32).astype(h_scr.dtype)

        @pl.when(l == 0)
        def _pre_mp():
            # pre_mp: Linear (no bias) -> BatchNorm1d, no activation (has_act=False).
            h0 = jnp.dot(x_ref[...], w_pre_ref[...],
                         preferred_element_type=jnp.float32)
            scale, shift = bn_scale_shift(
                jnp.sum(h0, axis=0, keepdims=True),
                jnp.sum(h0 * h0, axis=0, keepdims=True),
                g_pre_ref[...], b_pre_ref[...])
            fuse_store(h0 * scale + shift)

        @pl.when(l > 0)
        def _finalize_prev_layer():
            # Finalize previous MP layer from the streamed stats: BN + ReLU.
            scale, shift = bn_scale_shift(s1_scr[...], s2_scr[...],
                                          g_mp_ref[l - 1], be_mp_ref[l - 1])
            fuse_store(jnp.maximum(z_scr[...] * scale + shift, 0.0))

        # Reset the streamed-BN accumulators for layer l.
        s1_scr[...] = jnp.zeros_like(s1_scr)
        s2_scr[...] = jnp.zeros_like(s2_scr)

    # ------------------------------------------------------------------------
    # MP stripe:  Z[tile] = A_hat[tile, :] @ (H_l W_l)  + streamed BN stats.
    # ------------------------------------------------------------------------
    @pl.when(is_mp)
    def _mp_stripe():
        row0 = pl.multiple_of(r * tile_rows, tile_rows)
        if a_resident:
            a_tile = a_ref[pl.ds(row0, tile_rows), :]
        else:
            a_tile = a_ref[...]
        z_tile = jnp.dot(a_tile, h_scr[...], preferred_element_type=jnp.float32)
        z_scr[pl.ds(row0, tile_rows), :] = z_tile
        # Padded rows of A_hat are all-zero -> padded rows of z_tile are zero,
        # so unmasked column sums ARE the masked batch statistics.
        s1_scr[...] += jnp.sum(z_tile, axis=0, keepdims=True)
        s2_scr[...] += jnp.sum(z_tile * z_tile, axis=0, keepdims=True)

    # ------------------------------------------------------------------------
    # Head phase (l == layers_mp): per-row-tile BN + ReLU + Linear head,
    # written to a row-tiled, lane-dense output block (pipelined writeback).
    # ------------------------------------------------------------------------
    @pl.when(l == layers_mp)
    def _head_stripe():
        row0 = pl.multiple_of(r * tile_rows, tile_rows)
        scale, shift = bn_scale_shift(s1_scr[...], s2_scr[...],
                                      g_mp_ref[layers_mp - 1],
                                      be_mp_ref[layers_mp - 1])
        h = jnp.maximum(z_scr[pl.ds(row0, tile_rows), :] * scale + shift, 0.0)
        out_ref[...] = (jnp.dot(h.astype(jnp.bfloat16), w_head_ref[...],
                                preferred_element_type=jnp.float32)
                        + b_head_ref[...])


# ----------------------------- preparation ----------------------------------

def _prepare(params, x, a_hat):
    """Pad everything to lane-dense shapes and cast the streamed operands to bf16."""
    n, dim_in = x.shape
    dim_inner = params["pre_w"].shape[1]
    dim_out = params["head_w"].shape[1]
    layers_mp = len(params["mp"])
    assert layers_mp >= 1

    n_pad = _round_up(max(n, TILE_ROWS), TILE_ROWS)
    din_p = _round_up(dim_in, LANE)
    c_p = _round_up(dim_inner, LANE)
    dout_p = _round_up(dim_out, LANE)

    return dict(
        n=n, dim_out=dim_out, layers_mp=layers_mp,
        n_pad=n_pad, c_p=c_p, dout_p=dout_p,
        n_tiles=n_pad // TILE_ROWS,
        x_p=_pad2(x, n_pad, din_p).astype(jnp.bfloat16),
        a_p=_pad2(a_hat.astype(jnp.float32), n_pad, n_pad).astype(jnp.bfloat16),
        w_pre=_pad2(params["pre_w"], din_p, c_p).astype(jnp.bfloat16),
        g_pre=_pad2(params["pre_gamma"], 1, c_p),
        b_pre=_pad2(params["pre_beta"], 1, c_p),
        w_mp=jnp.stack([_pad2(lp["w"], c_p, c_p) for lp in params["mp"]]
                       ).astype(jnp.bfloat16),
        g_mp=jnp.stack([_pad2(lp["gamma"], 1, c_p) for lp in params["mp"]]),
        be_mp=jnp.stack([_pad2(lp["beta"], 1, c_p) for lp in params["mp"]]),
        w_head=_pad2(params["head_w"], c_p, dout_p).astype(jnp.bfloat16),
        b_head=_pad2(params["head_b"], 1, dout_p),
    )


def _vmem_limit_bytes(p, a_resident):
    f32, bf16 = 4, 2
    n_pad, c_p, dout_p, layers = p["n_pad"], p["c_p"], p["dout_p"], p["layers_mp"]
    din_p = p["x_p"].shape[1]
    total = 0
    total += 2 * n_pad * din_p * bf16                                   # x (2 bufs)
    if a_resident:
        total += 2 * n_pad * n_pad * bf16                               # resident A (2 bufs)
    else:
        total += 3 * TILE_ROWS * n_pad * bf16                           # A stripes (3 bufs)
    total += 2 * (din_p * c_p + layers * c_p * c_p + c_p * dout_p) * bf16   # weights
    total += 2 * (3 + 2 * layers) * c_p * f32                           # gammas/betas/bias
    total += 2 * TILE_ROWS * dout_p * f32                               # out tiles
    total += n_pad * c_p * (bf16 + f32)                                 # h_scr + z_scr
    total += 2 * c_p * f32                                              # BN stats
    return min(96 * 1024 * 1024, max(32 * 1024 * 1024, int(1.25 * total)))


# ----------------------------- forward (Pallas) ------------------------------

def gnn_forward(params, x, a_hat, *, force_stream_a=False):
    p = _prepare(params, x, a_hat)
    n_pad, c_p, dout_p = p["n_pad"], p["c_p"], p["dout_p"]
    layers_mp, n_tiles = p["layers_mp"], p["n_tiles"]

    a_bytes = n_pad * n_pad * 2
    a_resident = (a_bytes <= A_RESIDENT_MAX_BYTES) and not force_stream_a

    kernel = functools.partial(
        _gnn_fused_kernel, n_real=p["n"], layers_mp=layers_mp,
        tile_rows=TILE_ROWS, a_resident=a_resident)

    def const2(shape):
        return pl.BlockSpec(shape, lambda l, r: (0, 0))

    def const3(shape):
        return pl.BlockSpec(shape, lambda l, r: (0, 0, 0))

    if a_resident:
        # A_hat DMA'd once and VMEM-resident for the whole network: removes the
        # per-layer re-streaming of the dominant HBM traffic.
        a_spec = const2((n_pad, n_pad))
    else:
        # Row stripes of A_hat, pinned to stripe 0 during the head phase so the
        # head does not re-stream A; triple-buffered so the layer-boundary
        # bubble at r == 0 does not drain the DMA queue.
        def a_map(l, r):
            return (jnp.where(l < layers_mp, r, 0), 0)
        try:
            a_spec = pl.BlockSpec((TILE_ROWS, n_pad), a_map,
                                  pipeline_mode=pl.Buffered(3))
        except (TypeError, AttributeError):
            a_spec = pl.BlockSpec((TILE_ROWS, n_pad), a_map)

    # Row-tiled output; block index pinned to tile 0 outside the head phase so
    # no block is flushed before the head writes it.
    def out_map(l, r):
        return (jnp.where(l == layers_mp, r, 0), 0)

    out_p = pl.pallas_call(
        kernel,
        out_shape=jax.ShapeDtypeStruct((n_pad, dout_p), jnp.float32),
        grid_spec=pltpu.PrefetchScalarGridSpec(
            num_scalar_prefetch=0,
            grid=(layers_mp + 1, n_tiles),         # last "layer" is the head phase
            in_specs=[
                const2(p["x_p"].shape),            # X (VMEM resident)
                a_spec,                            # A_hat (resident or streamed)
                const2(p["w_pre"].shape), const2(p["g_pre"].shape), const2(p["b_pre"].shape),
                const3(p["w_mp"].shape), const3(p["g_mp"].shape), const3(p["be_mp"].shape),
                const2(p["w_head"].shape), const2(p["b_head"].shape),
            ],
            out_specs=pl.BlockSpec((TILE_ROWS, dout_p), out_map),
            scratch_shapes=[
                pltpu.VMEM((n_pad, c_p), jnp.bfloat16),   # h_scr: fused H_l @ W_l
                pltpu.VMEM((n_pad, c_p), jnp.float32),    # z_scr: pre-norm aggregation
                pltpu.VMEM((1, c_p), jnp.float32),        # s1: streamed BN column sums
                pltpu.VMEM((1, c_p), jnp.float32),        # s2: streamed BN column sum-sq
            ],
        ),
        compiler_params=pltpu.CompilerParams(
            dimension_semantics=("arbitrary", "arbitrary"),
            vmem_limit_bytes=_vmem_limit_bytes(p, a_resident),
        ),
    )(p["x_p"], p["a_p"], p["w_pre"], p["g_pre"], p["b_pre"],
      p["w_mp"], p["g_mp"], p["be_mp"], p["w_head"], p["b_head"])

    return out_p[:p["n"], :p["dim_out"]]


# ----------------------------- pure-JAX reference ----------------------------

def gnn_reference(params, x, a_hat):
    """Mirrors the kernel math (same padding / bf16 casts / fused-W order)."""
    p = _prepare(params, x, a_hat)
    inv_n = 1.0 / float(p["n"])

    def bn(z, gamma, beta):
        mean = jnp.sum(z, axis=0, keepdims=True) * inv_n
        var = jnp.maximum(jnp.sum(z * z, axis=0, keepdims=True) * inv_n
                          - mean * mean, 0.0)
        inv = jax.lax.rsqrt(var + EPS)
        return z * (inv * gamma) + (beta - mean * inv * gamma)

    h0 = jnp.dot(p["x_p"], p["w_pre"], preferred_element_type=jnp.float32)
    h = bn(h0, p["g_pre"], p["b_pre"])                      # pre_mp: no activation
    for l in range(p["layers_mp"]):
        hf = jnp.dot(h.astype(jnp.bfloat16), p["w_mp"][l],
                     preferred_element_type=jnp.float32).astype(jnp.bfloat16)
        z = jnp.dot(p["a_p"], hf, preferred_element_type=jnp.float32)
        h = jnp.maximum(bn(z, p["g_mp"][l], p["be_mp"][l]), 0.0)
    out = (jnp.dot(h.astype(jnp.bfloat16), p["w_head"],
                   preferred_element_type=jnp.float32) + p["b_head"])
    return out[:p["n"], :p["dim_out"]]


# ----------------------------- parameters ------------------------------------

def _xavier_uniform(key, shape):
    fan_in, fan_out = shape
    limit = (6.0 / (fan_in + fan_out)) ** 0.5
    return jax.random.uniform(key, shape, jnp.float32, -limit, limit)


def init_params(key, dim_in, dim_inner, dim_out, layers_mp):
    keys = jax.random.split(key, 2 + layers_mp)
    params = {
        "pre_w": _xavier_uniform(keys[0], (dim_in, dim_inner)),
        "pre_gamma": jnp.ones((1, dim_inner), jnp.float32),
        "pre_beta": jnp.zeros((1, dim_inner), jnp.float32),
        "mp": [],
        "head_w": _xavier_uniform(keys[1], (dim_inner, dim_out)),
        "head_b": jnp.zeros((1, dim_out), jnp.float32),
    }
    for layer in range(layers_mp):
        params["mp"].append({
            "w": _xavier_uniform(keys[2 + layer], (dim_inner, dim_inner)),
            "gamma": jnp.ones((1, dim_inner), jnp.float32),
            "beta": jnp.zeros((1, dim_inner), jnp.float32),
        })
    return params


def build_normalized_adjacency(edge_index, num_nodes):
    """Dense A_hat = D^-1/2 (A + I) D^-1/2 from an edge_index [2, E]."""
    a = jnp.zeros((num_nodes, num_nodes), jnp.float32)
    a = a.at[edge_index[0], edge_index[1]].set(1.0)
    a = a.at[edge_index[1], edge_index[0]].set(1.0)  # undirected
    a = a + jnp.eye(num_nodes, dtype=jnp.float32)    # self loops
    deg = jnp.sum(a, axis=1)
    d_inv_sqrt = 1.0 / jnp.sqrt(deg)
    return a * d_inv_sqrt[:, None] * d_inv_sqrt[None, :]


# ----------------------------- main -------------------------------------------

if __name__ == "__main__":
    N = 200          # nodes (not a multiple of the row tile -> exercises padding)
    DIM_IN = 4       # input node feature dim
    DIM_INNER = 32   # cfg.gnn.dim_inner (padded to 128 inside the wrapper)
    DIM_OUT = 4      # output dim (padded to 128 for lane-dense stores, sliced back)
    LAYERS_MP = 2    # cfg.gnn.layers_mp

    key = jax.random.PRNGKey(0)
    k_x, k_p = jax.random.split(key)

    x = jax.random.normal(k_x, (N, DIM_IN), jnp.float32)

    # Deterministic ring graph: node i <-> node (i+1) % N
    src = jnp.arange(N, dtype=jnp.int32)
    dst = (src + 1) % N
    edge_index = jnp.stack([src, dst], axis=0)
    a_hat = build_normalized_adjacency(edge_index, N)

    params = init_params(k_p, DIM_IN, DIM_INNER, DIM_OUT, LAYERS_MP)

    ref = jax.block_until_ready(gnn_reference(params, x, a_hat))
    # Exercise both code paths: VMEM-resident A_hat and streamed A stripes.
    out_resident = jax.block_until_ready(gnn_forward(params, x, a_hat))
    out_streamed = jax.block_until_ready(
        gnn_forward(params, x, a_hat, force_stream_a=True))

    for out in (out_resident, out_streamed):
        assert out.shape == (N, DIM_OUT) and out.dtype == jnp.float32
        assert bool(jnp.all(jnp.isfinite(out)))
        max_err = float(jnp.max(jnp.abs(out - ref)))
        assert max_err < 5e-2, f"max abs err vs reference: {max_err}"
    print("KERNEL_OK")
</pallas_src>

<mosaic_0001>
module attributes {stable_mosaic.version = 11 : i64} {
  func.func @_gnn_fused_kernel(%arg0: i32, %arg1: i32, %arg2: memref<256x128xbf16, #tpu.memory_space<vmem>>, %arg3: memref<256x256xbf16, #tpu.memory_space<vmem>>, %arg4: memref<128x128xbf16, #tpu.memory_space<vmem>>, %arg5: memref<1x128xf32, #tpu.memory_space<vmem>>, %arg6: memref<1x128xf32, #tpu.memory_space<vmem>>, %arg7: memref<2x128x128xbf16, #tpu.memory_space<vmem>>, %arg8: memref<2x1x128xf32, #tpu.memory_space<vmem>>, %arg9: memref<2x1x128xf32, #tpu.memory_space<vmem>>, %arg10: memref<128x128xbf16, #tpu.memory_space<vmem>>, %arg11: memref<1x128xf32, #tpu.memory_space<vmem>>, %arg12: memref<128x128xf32, #tpu.memory_space<vmem>>, %arg13: memref<256x128xbf16, #tpu.memory_space<vmem>>, %arg14: memref<256x128xf32, #tpu.memory_space<vmem>>, %arg15: memref<1x128xf32, #tpu.memory_space<vmem>>, %arg16: memref<1x128xf32, #tpu.memory_space<vmem>>) attributes {dimension_semantics = [#tpu.dimension_semantics<arbitrary>, #tpu.dimension_semantics<arbitrary>], iteration_bounds = array<i64: 3, 2>, scalar_prefetch = 0 : i64, scratch_operands = 4 : i64, tpu.core_type = #tpu.core_type<tc>, window_params = [{pipeline_mode = #tpu.pipeline_mode<synchronous>, transform_indices = @transform_0, window_bounds = array<i64: 256, 128>}, {pipeline_mode = #tpu.pipeline_mode<synchronous>, transform_indices = @transform_1, window_bounds = array<i64: 256, 256>}, {pipeline_mode = #tpu.pipeline_mode<synchronous>, transform_indices = @transform_2, window_bounds = array<i64: 128, 128>}, {pipeline_mode = #tpu.pipeline_mode<synchronous>, transform_indices = @transform_3, window_bounds = array<i64: 1, 128>}, {pipeline_mode = #tpu.pipeline_mode<synchronous>, transform_indices = @transform_4, window_bounds = array<i64: 1, 128>}, {pipeline_mode = #tpu.pipeline_mode<synchronous>, transform_indices = @transform_5, window_bounds = array<i64: 2, 128, 128>}, {pipeline_mode = #tpu.pipeline_mode<synchronous>, transform_indices = @transform_6, window_bounds = array<i64: 2, 1, 128>}, {pipeline_mode = #tpu.pipeline_mode<synchronous>, transform_indices = @transform_7, window_bounds = array<i64: 2, 1, 128>}, {pipeline_mode = #tpu.pipeline_mode<synchronous>, transform_indices = @transform_8, window_bounds = array<i64: 128, 128>}, {pipeline_mode = #tpu.pipeline_mode<synchronous>, transform_indices = @transform_9, window_bounds = array<i64: 1, 128>}, {transform_indices = @transform_10, window_bounds = array<i64: 128, 128>}]} {
    %c2_i32 = arith.constant 2 : i32
    %0 = arith.cmpi slt, %arg0, %c2_i32 : i32
    %c0_i32 = arith.constant 0 : i32
    %1 = arith.cmpi eq, %arg1, %c0_i32 : i32
    %2 = arith.andi %1, %0 : i1
    %3 = arith.extui %2 : i1 to i32
    %c0_i32_0 = arith.constant 0 : i32
    %4 = arith.cmpi ne, %3, %c0_i32_0 : i32
    scf.if %4 {
      %c0_i32_4 = arith.constant 0 : i32
      %10 = arith.cmpi eq, %arg0, %c0_i32_4 : i32
      %11 = arith.extui %10 : i1 to i32
      %c0_i32_5 = arith.constant 0 : i32
      %12 = arith.cmpi ne, %11, %c0_i32_5 : i32
      scf.if %12 {
        %c0_12 = arith.constant 0 : index
        %c0_13 = arith.constant 0 : index
        %20 = vector.load %arg2[%c0_12, %c0_13] : memref<256x128xbf16, #tpu.memory_space<vmem>>, vector<256x128xbf16>
        %c0_14 = arith.constant 0 : index
        %c0_15 = arith.constant 0 : index
        %21 = vector.load %arg4[%c0_14, %c0_15] : memref<128x128xbf16, #tpu.memory_space<vmem>>, vector<128x128xbf16>
        %cst_16 = arith.constant dense<0.000000e+00> : vector<256x128xf32>
        %22 = tpu.matmul %20, %21, %cst_16 {dimension_numbers = #tpu.dot_dimension_numbers<[1], [0], [0], [1], [0, 0, 1, 1], [], []>} : vector<256x128xbf16>, vector<128x128xbf16>, vector<256x128xf32> -> vector<256x128xf32>
        %cst_17 = arith.constant dense<0.000000e+00> : vector<128xf32>
        %23 = vector.multi_reduction <add>, %22, %cst_17 [0] : vector<256x128xf32> to vector<128xf32>
        %24 = vector.shape_cast %23 : vector<128xf32> to vector<1x128xf32>
        %25 = arith.mulf %22, %22 : vector<256x128xf32>
        %cst_18 = arith.constant dense<0.000000e+00> : vector<128xf32>
        %26 = vector.multi_reduction <add>, %25, %cst_18 [0] : vector<256x128xf32> to vector<128xf32>
        %27 = vector.shape_cast %26 : vector<128xf32> to vector<1x128xf32>
        %c0_19 = arith.constant 0 : index
        %c0_20 = arith.constant 0 : index
        %28 = vector.load %arg5[%c0_19, %c0_20] : memref<1x128xf32, #tpu.memory_space<vmem>>, vector<1x128xf32>
        %c0_21 = arith.constant 0 : index
        %c0_22 = arith.constant 0 : index
        %29 = vector.load %arg6[%c0_21, %c0_22] : memref<1x128xf32, #tpu.memory_space<vmem>>, vector<1x128xf32>
        %cst_23 = arith.constant 5.000000e-03 : f32
        %30 = vector.broadcast %cst_23 : f32 to vector<1x128xf32>
        %31 = arith.mulf %24, %30 : vector<1x128xf32>
        %cst_24 = arith.constant 5.000000e-03 : f32
        %32 = vector.broadcast %cst_24 : f32 to vector<1x128xf32>
        %33 = arith.mulf %27, %32 : vector<1x128xf32>
        %34 = arith.mulf %31, %31 : vector<1x128xf32>
        %35 = arith.subf %33, %34 : vector<1x128xf32>
        %cst_25 = arith.constant 0.000000e+00 : f32
        %36 = vector.broadcast %cst_25 : f32 to vector<1x128xf32>
        %37 = arith.maximumf %35, %36 : vector<1x128xf32>
        %cst_26 = arith.constant 9.99999974E-6 : f32
        %38 = vector.broadcast %cst_26 : f32 to vector<1x128xf32>
        %39 = arith.addf %37, %38 : vector<1x128xf32>
        %40 = math.rsqrt %39 : vector<1x128xf32>
        %41 = arith.mulf %40, %28 : vector<1x128xf32>
        %42 = arith.mulf %31, %41 : vector<1x128xf32>
        %43 = arith.subf %29, %42 : vector<1x128xf32>
        %44 = vector.broadcast %41 : vector<1x128xf32> to vector<256x128xf32>
        %45 = arith.mulf %22, %44 : vector<256x128xf32>
        %46 = vector.broadcast %43 : vector<1x128xf32> to vector<256x128xf32>
        %47 = arith.addf %45, %46 : vector<256x128xf32>
        %48 = arith.truncf %47 : vector<256x128xf32> to vector<256x128xbf16>
        %49 = arith.index_cast %arg0 : i32 to index
        %c0_27 = arith.constant 0 : index
        %c0_28 = arith.constant 0 : index
        %50 = vector.load %arg7[%49, %c0_27, %c0_28] : memref<2x128x128xbf16, #tpu.memory_space<vmem>>, vector<1x128x128xbf16>
        %51 = vector.shape_cast %50 : vector<1x128x128xbf16> to vector<128x128xbf16>
        %cst_29 = arith.constant dense<0.000000e+00> : vector<256x128xf32>
        %52 = tpu.matmul %48, %51, %cst_29 {dimension_numbers = #tpu.dot_dimension_numbers<[1], [0], [0], [1], [0, 0, 1, 1], [], []>} : vector<256x128xbf16>, vector<128x128xbf16>, vector<256x128xf32> -> vector<256x128xf32>
        %53 = arith.truncf %52 : vector<256x128xf32> to vector<256x128xbf16>
        %c0_30 = arith.constant 0 : index
        %c0_31 = arith.constant 0 : index
        %54 = vector.load %arg13[%c0_30, %c0_31] : memref<256x128xbf16, #tpu.memory_space<vmem>>, vector<256x128xbf16>
        tpu.vector_store %arg13[%c0_30, %c0_31], %53 {strides = array<i32>} : memref<256x128xbf16, #tpu.memory_space<vmem>>, vector<256x128xbf16>,
      } else {
      }
      %c0_i32_6 = arith.constant 0 : i32
      %13 = arith.cmpi sgt, %arg0, %c0_i32_6 : i32
      %14 = arith.extui %13 : i1 to i32
      %c0_i32_7 = arith.constant 0 : i32
      %15 = arith.cmpi ne, %14, %c0_i32_7 : i32
      scf.if %15 {
        %c0_12 = arith.constant 0 : index
        %c0_13 = arith.constant 0 : index
        %20 = vector.load %arg15[%c0_12, %c0_13] : memref<1x128xf32, #tpu.memory_space<vmem>>, vector<1x128xf32>
        %c0_14 = arith.constant 0 : index
        %c0_15 = arith.constant 0 : index
        %21 = vector.load %arg16[%c0_14, %c0_15] : memref<1x128xf32, #tpu.memory_space<vmem>>, vector<1x128xf32>
        %c1_i32 = arith.constant 1 : i32
        %22 = arith.subi %arg0, %c1_i32 : i32
        %23 = arith.index_cast %22 : i32 to index
        %c0_16 = arith.constant 0 : index
        %c0_17 = arith.constant 0 : index
        %24 = vector.load %arg8[%23, %c0_16, %c0_17] : memref<2x1x128xf32, #tpu.memory_space<vmem>>, vector<1x1x128xf32>
        %25 = vector.shape_cast %24 : vector<1x1x128xf32> to vector<1x128xf32>
        %c1_i32_18 = arith.constant 1 : i32
        %26 = arith.subi %arg0, %c1_i32_18 : i32
        %27 = arith.index_cast %26 : i32 to index
        %c0_19 = arith.constant 0 : index
        %c0_20 = arith.constant 0 : index
        %28 = vector.load %arg9[%27, %c0_19, %c0_20] : memref<2x1x128xf32, #tpu.memory_space<vmem>>, vector<1x1x128xf32>
        %29 = vector.shape_cast %28 : vector<1x1x128xf32> to vector<1x128xf32>
        %cst_21 = arith.constant 5.000000e-03 : f32
        %30 = vector.broadcast %cst_21 : f32 to vector<1x128xf32>
        %31 = arith.mulf %20, %30 : vector<1x128xf32>
        %cst_22 = arith.constant 5.000000e-03 : f32
        %32 = vector.broadcast %cst_22 : f32 to vector<1x128xf32>
        %33 = arith.mulf %21, %32 : vector<1x128xf32>
        %34 = arith.mulf %31, %31 : vector<1x128xf32>
        %35 = arith.subf %33, %34 : vector<1x128xf32>
        %cst_23 = arith.constant 0.000000e+00 : f32
        %36 = vector.broadcast %cst_23 : f32 to vector<1x128xf32>
        %37 = arith.maximumf %35, %36 : vector<1x128xf32>
        %cst_24 = arith.constant 9.99999974E-6 : f32
        %38 = vector.broadcast %cst_24 : f32 to vector<1x128xf32>
        %39 = arith.addf %37, %38 : vector<1x128xf32>
        %40 = math.rsqrt %39 : vector<1x128xf32>
        %41 = arith.mulf %40, %25 : vector<1x128xf32>
        %42 = arith.mulf %31, %41 : vector<1x128xf32>
        %43 = arith.subf %29, %42 : vector<1x128xf32>
        %c0_25 = arith.constant 0 : index
        %c0_26 = arith.constant 0 : index
        %44 = vector.load %arg14[%c0_25, %c0_26] : memref<256x128xf32, #tpu.memory_space<vmem>>, vector<256x128xf32>
        %45 = vector.broadcast %41 : vector<1x128xf32> to vector<256x128xf32>
        %46 = arith.mulf %44, %45 : vector<256x128xf32>
        %47 = vector.broadcast %43 : vector<1x128xf32> to vector<256x128xf32>
        %48 = arith.addf %46, %47 : vector<256x128xf32>
        %cst_27 = arith.constant 0.000000e+00 : f32
        %49 = vector.broadcast %cst_27 : f32 to vector<256x128xf32>
        %50 = arith.maximumf %48, %49 : vector<256x128xf32>
        %51 = arith.truncf %50 : vector<256x128xf32> to vector<256x128xbf16>
        %52 = arith.index_cast %arg0 : i32 to index
        %c0_28 = arith.constant 0 : index
        %c0_29 = arith.constant 0 : index
        %53 = vector.load %arg7[%52, %c0_28, %c0_29] : memref<2x128x128xbf16, #tpu.memory_space<vmem>>, vector<1x128x128xbf16>
        %54 = vector.shape_cast %53 : vector<1x128x128xbf16> to vector<128x128xbf16>
        %cst_30 = arith.constant dense<0.000000e+00> : vector<256x128xf32>
        %55 = tpu.matmul %51, %54, %cst_30 {dimension_numbers = #tpu.dot_dimension_numbers<[1], [0], [0], [1], [0, 0, 1, 1], [], []>} : vector<256x128xbf16>, vector<128x128xbf16>, vector<256x128xf32> -> vector<256x128xf32>
        %56 = arith.truncf %55 : vector<256x128xf32> to vector<256x128xbf16>
        %c0_31 = arith.constant 0 : index
        %c0_32 = arith.constant 0 : index
        %57 = vector.load %arg13[%c0_31, %c0_32] : memref<256x128xbf16, #tpu.memory_space<vmem>>, vector<256x128xbf16>
        tpu.vector_store %arg13[%c0_31, %c0_32], %56 {strides = array<i32>} : memref<256x128xbf16, #tpu.memory_space<vmem>>, vector<256x128xbf16>,
      } else {
      }
      %cst = arith.constant 0.000000e+00 : f32
      %16 = vector.broadcast %cst : f32 to vector<1x128xf32>
      %c0 = arith.constant 0 : index
      %c0_8 = arith.constant 0 : index
      %17 = vector.load %arg15[%c0, %c0_8] : memref<1x128xf32, #tpu.memory_space<vmem>>, vector<1x128xf32>
      tpu.vector_store %arg15[%c0, %c0_8], %16 {strides = array<i32>} : memref<1x128xf32, #tpu.memory_space<vmem>>, vector<1x128xf32>,
      %cst_9 = arith.constant 0.000000e+00 : f32
      %18 = vector.broadcast %cst_9 : f32 to vector<1x128xf32>
      %c0_10 = arith.constant 0 : index
      %c0_11 = arith.constant 0 : index
      %19 = vector.load %arg16[%c0_10, %c0_11] : memref<1x128xf32, #tpu.memory_space<vmem>>, vector<1x128xf32>
      tpu.vector_store %arg16[%c0_10, %c0_11], %18 {strides = array<i32>} : memref<1x128xf32, #tpu.memory_space<vmem>>, vector<1x128xf32>,
    } else {
    }
    %5 = arith.extui %0 : i1 to i32
    %c0_i32_1 = arith.constant 0 : i32
    %6 = arith.cmpi ne, %5, %c0_i32_1 : i32
    scf.if %6 {
      %c128_i32 = arith.constant 128 : i32
      %10 = arith.muli %arg1, %c128_i32 : i32
      %11 = tpu.assume_multiple %10, 128 : i32
      %12 = arith.index_cast %11 : i32 to index
      %c0 = arith.constant 0 : index
      %13 = vector.load %arg3[%12, %c0] : memref<256x256xbf16, #tpu.memory_space<vmem>>, vector<128x256xbf16>
      %c0_4 = arith.constant 0 : index
      %c0_5 = arith.constant 0 : index
      %14 = vector.load %arg13[%c0_4, %c0_5] : memref<256x128xbf16, #tpu.memory_space<vmem>>, vector<256x128xbf16>
      %cst = arith.constant dense<0.000000e+00> : vector<128x128xf32>
      %15 = tpu.matmul %13, %14, %cst {dimension_numbers = #tpu.dot_dimension_numbers<[1], [0], [0], [1], [0, 0, 1, 1], [], []>} : vector<128x256xbf16>, vector<256x128xbf16>, vector<128x128xf32> -> vector<128x128xf32>
      %16 = arith.index_cast %11 : i32 to index
      %c0_6 = arith.constant 0 : index
      %17 = vector.load %arg14[%16, %c0_6] : memref<256x128xf32, #tpu.memory_space<vmem>>, vector<128x128xf32>
      tpu.vector_store %arg14[%16, %c0_6], %15 {strides = array<i32>} : memref<256x128xf32, #tpu.memory_space<vmem>>, vector<128x128xf32>,
      %c0_7 = arith.constant 0 : index
      %c0_8 = arith.constant 0 : index
      %18 = vector.load %arg15[%c0_7, %c0_8] : memref<1x128xf32, #tpu.memory_space<vmem>>, vector<1x128xf32>
      %cst_9 = arith.constant dense<0.000000e+00> : vector<128xf32>
      %19 = vector.multi_reduction <add>, %15, %cst_9 [0] : vector<128x128xf32> to vector<128xf32>
      %20 = vector.shape_cast %19 : vector<128xf32> to vector<1x128xf32>
      %21 = arith.addf %18, %20 : vector<1x128xf32>
      %c0_10 = arith.constant 0 : index
      %c0_11 = arith.constant 0 : index
      %22 = vector.load %arg15[%c0_10, %c0_11] : memref<1x128xf32, #tpu.memory_space<vmem>>, vector<1x128xf32>
      tpu.vector_store %arg15[%c0_10, %c0_11], %21 {strides = array<i32>} : memref<1x128xf32, #tpu.memory_space<vmem>>, vector<1x128xf32>,
      %c0_12 = arith.constant 0 : index
      %c0_13 = arith.constant 0 : index
      %23 = vector.load %arg16[%c0_12, %c0_13] : memref<1x128xf32, #tpu.memory_space<vmem>>, vector<1x128xf32>
      %24 = arith.mulf %15, %15 : vector<128x128xf32>
      %cst_14 = arith.constant dense<0.000000e+00> : vector<128xf32>
      %25 = vector.multi_reduction <add>, %24, %cst_14 [0] : vector<128x128xf32> to vector<128xf32>
      %26 = vector.shape_cast %25 : vector<128xf32> to vector<1x128xf32>
      %27 = arith.addf %23, %26 : vector<1x128xf32>
      %c0_15 = arith.constant 0 : index
      %c0_16 = arith.constant 0 : index
      %28 = vector.load %arg16[%c0_15, %c0_16] : memref<1x128xf32, #tpu.memory_space<vmem>>, vector<1x128xf32>
      tpu.vector_store %arg16[%c0_15, %c0_16], %27 {strides = array<i32>} : memref<1x128xf32, #tpu.memory_space<vmem>>, vector<1x128xf32>,
    } else {
    }
    %c2_i32_2 = arith.constant 2 : i32
    %7 = arith.cmpi eq, %arg0, %c2_i32_2 : i32
    %8 = arith.extui %7 : i1 to i32
    %c0_i32_3 = arith.constant 0 : i32
    %9 = arith.cmpi ne, %8, %c0_i32_3 : i32
    scf.if %9 {
      %c128_i32 = arith.constant 128 : i32
      %10 = arith.muli %arg1, %c128_i32 : i32
      %11 = tpu.assume_multiple %10, 128 : i32
      %c0 = arith.constant 0 : index
      %c0_4 = arith.constant 0 : index
      %12 = vector.load %arg15[%c0, %c0_4] : memref<1x128xf32, #tpu.memory_space<vmem>>, vector<1x128xf32>
      %c0_5 = arith.constant 0 : index
      %c0_6 = arith.constant 0 : index
      %13 = vector.load %arg16[%c0_5, %c0_6] : memref<1x128xf32, #tpu.memory_space<vmem>>, vector<1x128xf32>
      %c1 = arith.constant 1 : index
      %c0_7 = arith.constant 0 : index
      %c0_8 = arith.constant 0 : index
      %14 = vector.load %arg8[%c1, %c0_7, %c0_8] : memref<2x1x128xf32, #tpu.memory_space<vmem>>, vector<1x1x128xf32>
      %15 = vector.shape_cast %14 : vector<1x1x128xf32> to vector<1x128xf32>
      %c1_9 = arith.constant 1 : index
      %c0_10 = arith.constant 0 : index
      %c0_11 = arith.constant 0 : index
      %16 = vector.load %arg9[%c1_9, %c0_10, %c0_11] : memref<2x1x128xf32, #tpu.memory_space<vmem>>, vector<1x1x128xf32>
      %17 = vector.shape_cast %16 : vector<1x1x128xf32> to vector<1x128xf32>
      %cst = arith.constant 5.000000e-03 : f32
      %18 = vector.broadcast %cst : f32 to vector<1x128xf32>
      %19 = arith.mulf %12, %18 : vector<1x128xf32>
      %cst_12 = arith.constant 5.000000e-03 : f32
      %20 = vector.broadcast %cst_12 : f32 to vector<1x128xf32>
      %21 = arith.mulf %13, %20 : vector<1x128xf32>
      %22 = arith.mulf %19, %19 : vector<1x128xf32>
      %23 = arith.subf %21, %22 : vector<1x128xf32>
      %cst_13 = arith.constant 0.000000e+00 : f32
      %24 = vector.broadcast %cst_13 : f32 to vector<1x128xf32>
      %25 = arith.maximumf %23, %24 : vector<1x128xf32>
      %cst_14 = arith.constant 9.99999974E-6 : f32
      %26 = vector.broadcast %cst_14 : f32 to vector<1x128xf32>
      %27 = arith.addf %25, %26 : vector<1x128xf32>
      %28 = math.rsqrt %27 : vector<1x128xf32>
      %29 = arith.mulf %28, %15 : vector<1x128xf32>
      %30 = arith.mulf %19, %29 : vector<1x128xf32>
      %31 = arith.subf %17, %30 : vector<1x128xf32>
      %32 = arith.index_cast %11 : i32 to index
      %c0_15 = arith.constant 0 : index
      %33 = vector.load %arg14[%32, %c0_15] : memref<256x128xf32, #tpu.memory_space<vmem>>, vector<128x128xf32>
      %34 = vector.broadcast %29 : vector<1x128xf32> to vector<128x128xf32>
      %35 = arith.mulf %33, %34 : vector<128x128xf32>
      %36 = vector.broadcast %31 : vector<1x128xf32> to vector<128x128xf32>
      %37 = arith.addf %35, %36 : vector<128x128xf32>
      %cst_16 = arith.constant 0.000000e+00 : f32
      %38 = vector.broadcast %cst_16 : f32 to vector<128x128xf32>
      %39 = arith.maximumf %37, %38 : vector<128x128xf32>
      %40 = arith.truncf %39 : vector<128x128xf32> to vector<128x128xbf16>
      %c0_17 = arith.constant 0 : index
      %c0_18 = arith.constant 0 : index
      %41 = vector.load %arg10[%c0_17, %c0_18] : memref<128x128xbf16, #tpu.memory_space<vmem>>, vector<128x128xbf16>
      %cst_19 = arith.constant dense<0.000000e+00> : vector<128x128xf32>
      %42 = tpu.matmul %40, %41, %cst_19 {dimension_numbers = #tpu.dot_dimension_numbers<[1], [0], [0], [1], [0, 0, 1, 1], [], []>} : vector<128x128xbf16>, vector<128x128xbf16>, vector<128x128xf32> -> vector<128x128xf32>
      %c0_20 = arith.constant 0 : index
      %c0_21 = arith.constant 0 : index
      %43 = vector.load %arg11[%c0_20, %c0_21] : memref<1x128xf32, #tpu.memory_space<vmem>>, vector<1x128xf32>
      %44 = vector.broadcast %43 : vector<1x128xf32> to vector<128x128xf32>
      %45 = arith.addf %42, %44 : vector<128x128xf32>
      %c0_22 = arith.constant 0 : index
      %c0_23 = arith.constant 0 : index
      %46 = vector.load %arg12[%c0_22, %c0_23] : memref<128x128xf32, #tpu.memory_space<vmem>>, vector<128x128xf32>
      tpu.vector_store %arg12[%c0_22, %c0_23], %45 {strides = array<i32>} : memref<128x128xf32, #tpu.memory_space<vmem>>, vector<128x128xf32>,
    } else {
    }
    return
  }
  func.func @transform_0(%arg0: i32, %arg1: i32) -> (i32, i32) {
    %c0_i32 = arith.constant 0 : i32
    %c0_i32_0 = arith.constant 0 : i32
    %c0_i32_1 = arith.constant 0 : i32
    return %c0_i32, %c0_i32_0 : i32, i32
  }
  func.func @transform_1(%arg0: i32, %arg1: i32) -> (i32, i32) {
    %c0_i32 = arith.constant 0 : i32
    %c0_i32_0 = arith.constant 0 : i32
    %c0_i32_1 = arith.constant 0 : i32
    return %c0_i32, %c0_i32_0 : i32, i32
  }
  func.func @transform_2(%arg0: i32, %arg1: i32) -> (i32, i32) {
    %c0_i32 = arith.constant 0 : i32
    %c0_i32_0 = arith.constant 0 : i32
    %c0_i32_1 = arith.constant 0 : i32
    return %c0_i32, %c0_i32_0 : i32, i32
  }
  func.func @transform_3(%arg0: i32, %arg1: i32) -> (i32, i32) {
    %c0_i32 = arith.constant 0 : i32
    %c0_i32_0 = arith.constant 0 : i32
    %c0_i32_1 = arith.constant 0 : i32
    return %c0_i32, %c0_i32_0 : i32, i32
  }
  func.func @transform_4(%arg0: i32, %arg1: i32) -> (i32, i32) {
    %c0_i32 = arith.constant 0 : i32
    %c0_i32_0 = arith.constant 0 : i32
    %c0_i32_1 = arith.constant 0 : i32
    return %c0_i32, %c0_i32_0 : i32, i32
  }
  func.func @transform_5(%arg0: i32, %arg1: i32) -> (i32, i32, i32) {
    %c0_i32 = arith.constant 0 : i32
    %c0_i32_0 = arith.constant 0 : i32
    %c0_i32_1 = arith.constant 0 : i32
    %c0_i32_2 = arith.constant 0 : i32
    return %c0_i32, %c0_i32_0, %c0_i32_1 : i32, i32, i32
  }
  func.func @transform_6(%arg0: i32, %arg1: i32) -> (i32, i32, i32) {
    %c0_i32 = arith.constant 0 : i32
    %c0_i32_0 = arith.constant 0 : i32
    %c0_i32_1 = arith.constant 0 : i32
    %c0_i32_2 = arith.constant 0 : i32
    return %c0_i32, %c0_i32_0, %c0_i32_1 : i32, i32, i32
  }
  func.func @transform_7(%arg0: i32, %arg1: i32) -> (i32, i32, i32) {
    %c0_i32 = arith.constant 0 : i32
    %c0_i32_0 = arith.constant 0 : i32
    %c0_i32_1 = arith.constant 0 : i32
    %c0_i32_2 = arith.constant 0 : i32
    return %c0_i32, %c0_i32_0, %c0_i32_1 : i32, i32, i32
  }
  func.func @transform_8(%arg0: i32, %arg1: i32) -> (i32, i32) {
    %c0_i32 = arith.constant 0 : i32
    %c0_i32_0 = arith.constant 0 : i32
    %c0_i32_1 = arith.constant 0 : i32
    return %c0_i32, %c0_i32_0 : i32, i32
  }
  func.func @transform_9(%arg0: i32, %arg1: i32) -> (i32, i32) {
    %c0_i32 = arith.constant 0 : i32
    %c0_i32_0 = arith.constant 0 : i32
    %c0_i32_1 = arith.constant 0 : i32
    return %c0_i32, %c0_i32_0 : i32, i32
  }
  func.func @transform_10(%arg0: i32, %arg1: i32) -> (i32, i32) {
    %c2_i32 = arith.constant 2 : i32
    %0 = arith.cmpi eq, %arg0, %c2_i32 : i32
    %c0_i32 = arith.constant 0 : i32
    %1 = arith.select %0, %arg1, %c0_i32 : i32
    %c0_i32_0 = arith.constant 0 : i32
    %c0_i32_1 = arith.constant 0 : i32
    return %1, %c0_i32_0 : i32, i32
  }
}

</mosaic_0001>

<llo_original>
// kernel: tpu_custom_call.1
$region0: #{tpu_custom_call.1}
  #allocation0 [shape = 'u32[]', space=smem, size = 0x4, offset = 0x4, fixed_abs, tag = 'smem constant byte address 0x4 - core index']
  #allocation1 [shape = 'u32[144,128]{1,0:T(1,128)}', space=vmem, size = 0x12000, scoped, tag = 'internal scratch']
  #allocation2 [shape = 'bf16[256,128]{1,0:T(16,128)(2,1)}', space=vmem, size = 0x10000, scoped, tag = 'scratch operand']
  #allocation3 [shape = 'f32[256,128]{1,0:T(8,128)}', space=vmem, size = 0x20000, scoped, tag = 'scratch operand']
  #allocation4 [shape = 'f32[1,128]{1,0:T(1,128)}', space=vmem, size = 0x200, scoped, tag = 'scratch operand']
  #allocation5 [shape = 'f32[1,128]{1,0:T(1,128)}', space=vmem, size = 0x200, scoped, tag = 'scratch operand']
  %s0 = inlined_call_operand.hbm [shape: bf16[256,128], index: 0, kind: input, shape index: {}]
  %s1 = inlined_call_operand.hbm [shape: bf16[256,256], index: 1, kind: input, shape index: {}]
  %s2 = inlined_call_operand.hbm [shape: bf16[128,128], index: 2, kind: input, shape index: {}]
  %s3 = inlined_call_operand.vmem [shape: f32[1,128], index: 3, kind: input, shape index: {}]
  %s4 = inlined_call_operand.vmem [shape: f32[1,128], index: 4, kind: input, shape index: {}]
  %s5 = inlined_call_operand.hbm [shape: bf16[2,128,128], index: 5, kind: input, shape index: {}]
  %s6 = inlined_call_operand.vmem [shape: f32[2,1,128], index: 6, kind: input, shape index: {}]
  %s7 = inlined_call_operand.vmem [shape: f32[2,1,128], index: 7, kind: input, shape index: {}]
  %s8 = inlined_call_operand.hbm [shape: bf16[128,128], index: 8, kind: input, shape index: {}]
  %s9 = inlined_call_operand.vmem [shape: f32[1,128], index: 9, kind: input, shape index: {}]
  %s10 = inlined_call_operand.hbm [shape: f32[256,128], index: 10, kind: output, shape index: {}]
  %s11 = sld [smem:[#allocation0]]
  $region113: #{tpu_custom_call.1} parent=0
    _
  %s13 = ssub.s32 1, %s11
  %s14 = scalar_select 0, %s13, %s11
  $region1: #{tpu_custom_call.1} parent=0
    #allocation6 [shape = 'u8[65536]{0}', space=vmem, size = 0x10000, scoped, tag = 'input window, operand 0, single buffered']
    #allocation7 [shape = 's32[2]{0}', space=sflag, size = 0x8, scoped, tag = 'scoped memory for tpu_custom_call.1']
    #allocation8 [shape = 's32[2]{0}', space=sflag, size = 0x8, scoped, tag = 'scoped memory for tpu_custom_call.1']
    #allocation9 [shape = 'u8[131072]{0}', space=vmem, size = 0x20000, scoped, tag = 'input window, operand 1, single buffered']
    #allocation10 [shape = 's32[1]{0}', space=sflag, size = 0x4, scoped, tag = 'scoped memory for tpu_custom_call.1']
    #allocation11 [shape = 'u8[32768]{0}', space=vmem, size = 0x8000, scoped, tag = 'input window, operand 2, single buffered']
    #allocation12 [shape = 'u8[65536]{0}', space=vmem, size = 0x10000, scoped, tag = 'input window, operand 5, single buffered']
    #allocation13 [shape = 's32[1]{0}', space=sflag, size = 0x4, scoped, tag = 'scoped memory for tpu_custom_call.1']
    #allocation14 [shape = 'u8[32768]{0}', space=vmem, size = 0x8000, scoped, tag = 'input window, operand 8, single buffered']
    #allocation15 [shape = 'u8[131072]{0}', space=vmem, size = 0x20000, scoped, tag = 'output window, operand 0']
    %15 = vsyncpa [#allocation7], 0
    %16 = vsyncpa [#allocation10], 0
    %17 = vsyncpa [#allocation13], 0
    %18 = vsyncpa [#allocation8], 0
    %s19 = scalar_lea.sflag [#allocation8], 1
    %20 = vsyncpa %s19, 0
    loop: start=0, step=1, limit=8
    $region2: #{tpu_custom_call.1} parent=1 // loop_pre_header
      _
    $region3: #{tpu_custom_call.1} parent=1 // loop_header
      %s22 = sphi 0, %s26
      %p23 = scmp.ge.s32.totalorder %s22, 8
      %s29 = sphi 0, %s41
      %s30 = sphi 0, %s37
      %s31 = sphi 0, %s29
      %s32 = sphi 0, %s30
      %s33 = sphi 0, %s31
      %s34 = sphi 0, %s32
      %s42 = sphi 0, %s42
      %s44 = sphi 0, %s42
      %s45 = sphi 0, %s44
      %s59 = sphi 0, %s45
      %s63 = sphi 0, %s63
      %s65 = sphi 0, %s63
      %s66 = sphi 0, %s65
      %s80 = sphi 0, %s66
      %s84 = sphi 0, %s84
      %s86 = sphi 0, %s84
      %s87 = sphi 0, %s86
      %s101 = sphi 0, %s87
      %s105 = sphi 0, %s105
      %s107 = sphi 0, %s105
      %s108 = sphi 0, %s107
      %s122 = sphi 0, %s108
      %s126 = sphi 0, %s126
      %s128 = sphi 0, %s126
      %s129 = sphi 0, %s128
      %s143 = sphi 0, %s129
      %s147 = sphi 0, %s147
      %s149 = sphi 0, %s147
      %s150 = sphi 0, %s149
      %s164 = sphi 0, %s150
      %s168 = sphi 0, %s168
      %s170 = sphi 0, %s168
      %s171 = sphi 0, %s170
      %s185 = sphi 0, %s171
      %s189 = sphi 0, %s189
      %s191 = sphi 0, %s189
      %s192 = sphi 0, %s191
      %s206 = sphi 0, %s192
      %s210 = sphi 0, %s210
      %s212 = sphi 0, %s210
      %s213 = sphi 0, %s212
      %s227 = sphi 0, %s213
      %s231 = sphi 0, %s231
      %s233 = sphi 0, %s231
      %s234 = sphi 0, %s233
      %s248 = sphi 0, %s234
      %s258 = sphi 0, %s260
      %s261 = sphi 0, %s258
      %s262 = sphi 0, %s261
      %s278 = sphi 0, %s262
    $region4: #{tpu_custom_call.1} parent=1 // loop_header_branch
      %25 = sbr.rel (%p23) target = $region8
    $region5: #{tpu_custom_call.1} parent=1 // loop_body
      %s27 = ssub.s32 %s22, 1
      %s28 = ssub.s32 %s22, 2
      %s35 = sadd.s32 1, %s30
      %p36 = scmp.ge.s32.totalorder %s35, 2
      %s37 = scalar_select %p36, 0, %s35
      %s38 = sadd.s32 1, %s29
      %s39 = scalar_select %p36, %s38, %s29
      %p40 = scmp.ge.s32.totalorder %s39, 3
      %s41 = scalar_select %p40, 0, %s39
      %s43 = sadd.s32 %s42, 1
      %p46 = scmp.eq.s32.totalorder %s22, 5
      %p47 = scmp.ne.s32.totalorder %s42, %s44
      %p48 = scmp.eq.s32.totalorder %s22, 0
      %p49 = por %p47, %p48
      %p50 = scmp.ne.s32.totalorder %s42, %s44
      %p51 = scmp.eq.s32.totalorder %s27, 5
      %p52 = por %p50, %p51
      %p53 = scmp.ne.s32.totalorder %s44, %s45
      %p54 = scmp.eq.s32.totalorder %s27, 0
      %p55 = por %p53, %p54
      %p56 = scmp.ne.s32.totalorder %s44, %s45
      %p57 = scmp.eq.s32.totalorder %s28, 5
      %p58 = por %p56, %p57
      %p60 = scmp.ne.s32.totalorder %s45, %s59
      %p61 = scmp.eq.s32.totalorder %s28, 0
      %p62 = por %p60, %p61
      %s64 = sadd.s32 %s63, 1
      %p67 = scmp.eq.s32.totalorder %s22, 5
      %p68 = scmp.ne.s32.totalorder %s63, %s65
      %p69 = scmp.eq.s32.totalorder %s22, 0
      %p70 = por %p68, %p69
      %p71 = scmp.ne.s32.totalorder %s63, %s65
      %p72 = scmp.eq.s32.totalorder %s27, 5
      %p73 = por %p71, %p72
      %p74 = scmp.ne.s32.totalorder %s65, %s66
      %p75 = scmp.eq.s32.totalorder %s27, 0
      %p76 = por %p74, %p75
      %p77 = scmp.ne.s32.totalorder %s65, %s66
      %p78 = scmp.eq.s32.totalorder %s28, 5
      %p79 = por %p77, %p78
      %p81 = scmp.ne.s32.totalorder %s66, %s80
      %p82 = scmp.eq.s32.totalorder %s28, 0
      %p83 = por %p81, %p82
      %s85 = sadd.s32 %s84, 1
      %p88 = scmp.eq.s32.totalorder %s22, 5
      %p89 = scmp.ne.s32.totalorder %s84, %s86
      %p90 = scmp.eq.s32.totalorder %s22, 0
      %p91 = por %p89, %p90
      %p92 = scmp.ne.s32.totalorder %s84, %s86
      %p93 = scmp.eq.s32.totalorder %s27, 5
      %p94 = por %p92, %p93
      %p95 = scmp.ne.s32.totalorder %s86, %s87
      %p96 = scmp.eq.s32.totalorder %s27, 0
      %p97 = por %p95, %p96
      %p98 = scmp.ne.s32.totalorder %s86, %s87
      %p99 = scmp.eq.s32.totalorder %s28, 5
      %p100 = por %p98, %p99
      %p102 = scmp.ne.s32.totalorder %s87, %s101
      %p103 = scmp.eq.s32.totalorder %s28, 0
      %p104 = por %p102, %p103
      %s106 = sadd.s32 %s105, 1
      %p109 = scmp.eq.s32.totalorder %s22, 5
      %p110 = scmp.ne.s32.totalorder %s105, %s107
      %p111 = scmp.eq.s32.totalorder %s22, 0
      %p112 = por %p110, %p111
      %p113 = scmp.ne.s32.totalorder %s105, %s107
      %p114 = scmp.eq.s32.totalorder %s27, 5
      %p115 = por %p113, %p114
      %p116 = scmp.ne.s32.totalorder %s107, %s108
      %p117 = scmp.eq.s32.totalorder %s27, 0
      %p118 = por %p116, %p117
      %p119 = scmp.ne.s32.totalorder %s107, %s108
      %p120 = scmp.eq.s32.totalorder %s28, 5
      %p121 = por %p119, %p120
      %p123 = scmp.ne.s32.totalorder %s108, %s122
      %p124 = scmp.eq.s32.totalorder %s28, 0
      %p125 = por %p123, %p124
      %s127 = sadd.s32 %s126, 1
      %p130 = scmp.eq.s32.totalorder %s22, 5
      %p131 = scmp.ne.s32.totalorder %s126, %s128
      %p132 = scmp.eq.s32.totalorder %s22, 0
      %p133 = por %p131, %p132
      %p134 = scmp.ne.s32.totalorder %s126, %s128
      %p135 = scmp.eq.s32.totalorder %s27, 5
      %p136 = por %p134, %p135
      %p137 = scmp.ne.s32.totalorder %s128, %s129
      %p138 = scmp.eq.s32.totalorder %s27, 0
      %p139 = por %p137, %p138
      %p140 = scmp.ne.s32.totalorder %s128, %s129
      %p141 = scmp.eq.s32.totalorder %s28, 5
      %p142 = por %p140, %p141
      %p144 = scmp.ne.s32.totalorder %s129, %s143
      %p145 = scmp.eq.s32.totalorder %s28, 0
      %p146 = por %p144, %p145
      %s148 = sadd.s32 %s147, 1
      %p151 = scmp.eq.s32.totalorder %s22, 5
      %p152 = scmp.ne.s32.totalorder %s147, %s149
      %p153 = scmp.eq.s32.totalorder %s22, 0
      %p154 = por %p152, %p153
      %p155 = scmp.ne.s32.totalorder %s147, %s149
      %p156 = scmp.eq.s32.totalorder %s27, 5
      %p157 = por %p155, %p156
      %p158 = scmp.ne.s32.totalorder %s149, %s150
      %p159 = scmp.eq.s32.totalorder %s27, 0
      %p160 = por %p158, %p159
      %p161 = scmp.ne.s32.totalorder %s149, %s150
      %p162 = scmp.eq.s32.totalorder %s28, 5
      %p163 = por %p161, %p162
      %p165 = scmp.ne.s32.totalorder %s150, %s164
      %p166 = scmp.eq.s32.totalorder %s28, 0
      %p167 = por %p165, %p166
      %s169 = sadd.s32 %s168, 1
      %p172 = scmp.eq.s32.totalorder %s22, 5
      %p173 = scmp.ne.s32.totalorder %s168, %s170
      %p174 = scmp.eq.s32.totalorder %s22, 0
      %p175 = por %p173, %p174
      %p176 = scmp.ne.s32.totalorder %s168, %s170
      %p177 = scmp.eq.s32.totalorder %s27, 5
      %p178 = por %p176, %p177
      %p179 = scmp.ne.s32.totalorder %s170, %s171
      %p180 = scmp.eq.s32.totalorder %s27, 0
      %p181 = por %p179, %p180
      %p182 = scmp.ne.s32.totalorder %s170, %s171
      %p183 = scmp.eq.s32.totalorder %s28, 5
      %p184 = por %p182, %p183
      %p186 = scmp.ne.s32.totalorder %s171, %s185
      %p187 = scmp.eq.s32.totalorder %s28, 0
      %p188 = por %p186, %p187
      %s190 = sadd.s32 %s189, 1
      %p193 = scmp.eq.s32.totalorder %s22, 5
      %p194 = scmp.ne.s32.totalorder %s189, %s191
      %p195 = scmp.eq.s32.totalorder %s22, 0
      %p196 = por %p194, %p195
      %p197 = scmp.ne.s32.totalorder %s189, %s191
      %p198 = scmp.eq.s32.totalorder %s27, 5
      %p199 = por %p197, %p198
      %p200 = scmp.ne.s32.totalorder %s191, %s192
      %p201 = scmp.eq.s32.totalorder %s27, 0
      %p202 = por %p200, %p201
      %p203 = scmp.ne.s32.totalorder %s191, %s192
      %p204 = scmp.eq.s32.totalorder %s28, 5
      %p205 = por %p203, %p204
      %p207 = scmp.ne.s32.totalorder %s192, %s206
      %p208 = scmp.eq.s32.totalorder %s28, 0
      %p209 = por %p207, %p208
      %s211 = sadd.s32 %s210, 1
      %p214 = scmp.eq.s32.totalorder %s22, 5
      %p215 = scmp.ne.s32.totalorder %s210, %s212
      %p216 = scmp.eq.s32.totalorder %s22, 0
      %p217 = por %p215, %p216
      %p218 = scmp.ne.s32.totalorder %s210, %s212
      %p219 = scmp.eq.s32.totalorder %s27, 5
      %p220 = por %p218, %p219
      %p221 = scmp.ne.s32.totalorder %s212, %s213
      %p222 = scmp.eq.s32.totalorder %s27, 0
      %p223 = por %p221, %p222
      %p224 = scmp.ne.s32.totalorder %s212, %s213
      %p225 = scmp.eq.s32.totalorder %s28, 5
      %p226 = por %p224, %p225
      %p228 = scmp.ne.s32.totalorder %s213, %s227
      %p229 = scmp.eq.s32.totalorder %s28, 0
      %p230 = por %p228, %p229
      %s232 = sadd.s32 %s231, 1
      %p235 = scmp.eq.s32.totalorder %s22, 5
      %p236 = scmp.ne.s32.totalorder %s231, %s233
      %p237 = scmp.eq.s32.totalorder %s22, 0
      %p238 = por %p236, %p237
      %p239 = scmp.ne.s32.totalorder %s231, %s233
      %p240 = scmp.eq.s32.totalorder %s27, 5
      %p241 = por %p239, %p240
      %p242 = scmp.ne.s32.totalorder %s233, %s234
      %p243 = scmp.eq.s32.totalorder %s27, 0
      %p244 = por %p242, %p243
      %p245 = scmp.ne.s32.totalorder %s233, %s234
      %p246 = scmp.eq.s32.totalorder %s28, 5
      %p247 = por %p245, %p246
      %p249 = scmp.ne.s32.totalorder %s234, %s248
      %p250 = scmp.eq.s32.totalorder %s28, 0
      %p251 = por %p249, %p250
      %p252 = scmp.eq.s32.totalorder %s29, 2
      %s253 = scalar_select %p252, %s30, 0
      %p254 = scmp.eq.s32.totalorder %s41, 2
      %s255 = scalar_select %p254, %s37, 0
      %s256 = ssub.s32 %s253, %s255
      %p257 = scmp.eq.s32.totalorder %s256, 0
      %s259 = sadd.s32 %s258, 1
      %s260 = scalar_select %p257, %s258, %s259
      %p263 = pneg %p257
      %p264 = scmp.eq.s32.totalorder %s22, 5
      %p265 = por %p263, %p264
      %p266 = scmp.ne.s32.totalorder %s258, %s261
      %p267 = scmp.eq.s32.totalorder %s22, 0
      %p268 = por %p266, %p267
      %p269 = scmp.ne.s32.totalorder %s258, %s261
      %p270 = scmp.eq.s32.totalorder %s27, 5
      %p271 = por %p269, %p270
      %p272 = scmp.ne.s32.totalorder %s261, %s262
      %p273 = scmp.eq.s32.totalorder %s27, 0
      %p274 = por %p272, %p273
      %p275 = scmp.ne.s32.totalorder %s261, %s262
      %p276 = scmp.eq.s32.totalorder %s28, 5
      %p277 = por %p275, %p276
      %p279 = scmp.ne.s32.totalorder %s262, %s278
      %p280 = scmp.eq.s32.totalorder %s28, 0
      %p281 = por %p279, %p280
      %p282 = scmp.le.s32.totalorder 1, %s22
      %p283 = scmp.lt.s32.totalorder %s22, 7
      %p284 = pnand %p282, %p283
      %p285 = pneg %p284
      // Predicated region
      $region9: #{tpu_custom_call.1} parent=5 // pred_check
        _
      $region10: #{tpu_custom_call.1} parent=5 // pred_check_branch
        %287 = sbr.rel (%p284) target = $region12
      $region11: #{tpu_custom_call.1} parent=5 // pred_region
        %s288 = ssub.s32 %s22, 1
        // Predicated region
        $region13: #{tpu_custom_call.1} parent=11 // pred_check
          %p289 = pneg %p55
        $region14: #{tpu_custom_call.1} parent=11 // pred_check_branch
          %291 = sbr.rel (%p289) target = $region16
        $region15: #{tpu_custom_call.1} parent=11 // pred_region
          %s293 = ssub.s32 2048, 2048
          %294 = vsyncadd [#allocation7], %s293
          %s295 = sshll.u32 [#allocation6], 4
          %s296 = int_to_ptr.vmem [resolvable:$true] %s295
          %301 = dma.hbm_to_vmem [thread:$0]  %s0, 2048, %s296, [#allocation7], 64, 64, 4
        $region16: #{tpu_custom_call.1} parent=11 // pred_fallthru
          _
        // Predicated region
        $region17: #{tpu_custom_call.1} parent=11 // pred_check
          %p302 = pneg %p76
        $region18: #{tpu_custom_call.1} parent=11 // pred_check_branch
          %304 = sbr.rel (%p302) target = $region20
        $region19: #{tpu_custom_call.1} parent=11 // pred_region
          %s306 = ssub.s32 4096, 4096
          %307 = vsyncadd [#allocation10], %s306
          %s308 = sshll.u32 [#allocation9], 4
          %s309 = int_to_ptr.vmem [resolvable:$true] %s308
          %314 = dma.hbm_to_vmem [thread:$0]  %s1, 4096, %s309, [#allocation10], 128, 128, 8
        $region20: #{tpu_custom_call.1} parent=11 // pred_fallthru
          _
        // Predicated region
        $region21: #{tpu_custom_call.1} parent=11 // pred_check
          %p315 = pneg %p97
        $region22: #{tpu_custom_call.1} parent=11 // pred_check_branch
          %317 = sbr.rel (%p315) target = $region24
        $region23: #{tpu_custom_call.1} parent=11 // pred_region
          %s319 = ssub.s32 1024, 1024
          %320 = vsyncadd [#allocation10], %s319
          %s321 = sshll.u32 [#allocation11], 4
          %s322 = int_to_ptr.vmem [resolvable:$true] %s321
          %327 = dma.hbm_to_vmem [thread:$0]  %s2, 1024, %s322, [#allocation10], 64, 64, 4
        $region24: #{tpu_custom_call.1} parent=11 // pred_fallthru
          _
        // Predicated region
        $region25: #{tpu_custom_call.1} parent=11 // pred_check
          %p328 = pneg %p118
        $region26: #{tpu_custom_call.1} parent=11 // pred_check_branch
          %330 = sbr.rel (%p328) target = $region28
        $region27: #{tpu_custom_call.1} parent=11 // pred_region
          _
        $region28: #{tpu_custom_call.1} parent=11 // pred_fallthru
          _
        // Predicated region
        $region29: #{tpu_custom_call.1} parent=11 // pred_check
          %p331 = pneg %p139
        $region30: #{tpu_custom_call.1} parent=11 // pred_check_branch
          %333 = sbr.rel (%p331) target = $region32
        $region31: #{tpu_custom_call.1} parent=11 // pred_region
          _
        $region32: #{tpu_custom_call.1} parent=11 // pred_fallthru
          _
        // Predicated region
        $region33: #{tpu_custom_call.1} parent=11 // pred_check
          %p334 = pneg %p160
        $region34: #{tpu_custom_call.1} parent=11 // pred_check_branch
          %336 = sbr.rel (%p334) target = $region36
        $region35: #{tpu_custom_call.1} parent=11 // pred_region
          %s338 = ssub.s32 2048, 2048
          %339 = vsyncadd [#allocation13], %s338
          %s340 = sshll.u32 [#allocation12], 4
          %s341 = int_to_ptr.vmem [resolvable:$true] %s340
          %346 = dma.hbm_to_vmem [thread:$0]  %s5, 2048, %s341, [#allocation13], 64, 64, 4
        $region36: #{tpu_custom_call.1} parent=11 // pred_fallthru
          _
        // Predicated region
        $region37: #{tpu_custom_call.1} parent=11 // pred_check
          %p347 = pneg %p181
        $region38: #{tpu_custom_call.1} parent=11 // pred_check_branch
          %349 = sbr.rel (%p347) target = $region40
        $region39: #{tpu_custom_call.1} parent=11 // pred_region
          _
        $region40: #{tpu_custom_call.1} parent=11 // pred_fallthru
          _
        // Predicated region
        $region41: #{tpu_custom_call.1} parent=11 // pred_check
          %p350 = pneg %p202
        $region42: #{tpu_custom_call.1} parent=11 // pred_check_branch
          %352 = sbr.rel (%p350) target = $region44
        $region43: #{tpu_custom_call.1} parent=11 // pred_region
          _
        $region44: #{tpu_custom_call.1} parent=11 // pred_fallthru
          _
        // Predicated region
        $region45: #{tpu_custom_call.1} parent=11 // pred_check
          %p353 = pneg %p223
        $region46: #{tpu_custom_call.1} parent=11 // pred_check_branch
          %355 = sbr.rel (%p353) target = $region48
        $region47: #{tpu_custom_call.1} parent=11 // pred_region
          %s357 = ssub.s32 1024, 1024
          %358 = vsyncadd [#allocation13], %s357
          %s359 = sshll.u32 [#allocation14], 4
          %s360 = int_to_ptr.vmem [resolvable:$true] %s359
          %365 = dma.hbm_to_vmem [thread:$0]  %s8, 1024, %s360, [#allocation13], 64, 64, 4
        $region48: #{tpu_custom_call.1} parent=11 // pred_fallthru
          _
        // Predicated region
        $region49: #{tpu_custom_call.1} parent=11 // pred_check
          %p366 = pneg %p244
        $region50: #{tpu_custom_call.1} parent=11 // pred_check_branch
          %368 = sbr.rel (%p366) target = $region52
        $region51: #{tpu_custom_call.1} parent=11 // pred_region
          _
        $region52: #{tpu_custom_call.1} parent=11 // pred_fallthru
          _
      $region12: #{tpu_custom_call.1} parent=5 // pred_fallthru
        _
      %p369 = scmp.lt.s32.totalorder %s22, 6
      // Predicated region
      $region53: #{tpu_custom_call.1} parent=5 // pred_check
        %p370 = pneg %p369
      $region54: #{tpu_custom_call.1} parent=5 // pred_check_branch
        %372 = sbr.rel (%p370) target = $region56
      $region55: #{tpu_custom_call.1} parent=5 // pred_region
        _
      $region56: #{tpu_custom_call.1} parent=5 // pred_fallthru
        _
      %p373 = scmp.le.s32.totalorder 1, %s22
      %p374 = scmp.lt.s32.totalorder %s22, 7
      %p375 = pnand %p373, %p374
      %p376 = pneg %p375
      // Predicated region
      $region57: #{tpu_custom_call.1} parent=5 // pred_check
        _
      $region58: #{tpu_custom_call.1} parent=5 // pred_check_branch
        %378 = sbr.rel (%p375) target = $region60
      $region59: #{tpu_custom_call.1} parent=5 // pred_region
        %s379 = ssub.s32 %s22, 1
        // Predicated region
        $region61: #{tpu_custom_call.1} parent=59 // pred_check
          %p380 = pneg %p55
        $region62: #{tpu_custom_call.1} parent=59 // pred_check_branch
          %382 = sbr.rel (%p380) target = $region64
        $region63: #{tpu_custom_call.1} parent=59 // pred_region
          %383 = dma.done [#allocation7], 2048
        $region64: #{tpu_custom_call.1} parent=59 // pred_fallthru
          _
        // Predicated region
        $region65: #{tpu_custom_call.1} parent=59 // pred_check
          %p384 = pneg %p76
        $region66: #{tpu_custom_call.1} parent=59 // pred_check_branch
          %386 = sbr.rel (%p384) target = $region68
        $region67: #{tpu_custom_call.1} parent=59 // pred_region
          %387 = dma.done [#allocation10], 4096
        $region68: #{tpu_custom_call.1} parent=59 // pred_fallthru
          _
        // Predicated region
        $region69: #{tpu_custom_call.1} parent=59 // pred_check
          %p388 = pneg %p97
        $region70: #{tpu_custom_call.1} parent=59 // pred_check_branch
          %390 = sbr.rel (%p388) target = $region72
        $region71: #{tpu_custom_call.1} parent=59 // pred_region
          %391 = dma.done [#allocation10], 1024
        $region72: #{tpu_custom_call.1} parent=59 // pred_fallthru
          _
        // Predicated region
        $region73: #{tpu_custom_call.1} parent=59 // pred_check
          %p392 = pneg %p160
        $region74: #{tpu_custom_call.1} parent=59 // pred_check_branch
          %394 = sbr.rel (%p392) target = $region76
        $region75: #{tpu_custom_call.1} parent=59 // pred_region
          %395 = dma.done [#allocation13], 2048
        $region76: #{tpu_custom_call.1} parent=59 // pred_fallthru
          _
        // Predicated region
        $region77: #{tpu_custom_call.1} parent=59 // pred_check
          %p396 = pneg %p223
        $region78: #{tpu_custom_call.1} parent=59 // pred_check_branch
          %398 = sbr.rel (%p396) target = $region80
        $region79: #{tpu_custom_call.1} parent=59 // pred_region
          %399 = dma.done [#allocation13], 1024
        $region80: #{tpu_custom_call.1} parent=59 // pred_fallthru
          _
        %p400 = pneg %p55
        %p401 = pneg %p52
        %p402 = pneg %p76
        %p403 = pneg %p73
        %p404 = pneg %p97
        %p405 = pneg %p94
        %p406 = pneg %p118
        %p407 = pneg %p115
        %p408 = pneg %p139
        %p409 = pneg %p136
        %p410 = pneg %p160
        %p411 = pneg %p157
        %p412 = pneg %p181
        %p413 = pneg %p178
        %p414 = pneg %p202
        %p415 = pneg %p199
        %p416 = pneg %p223
        %p417 = pneg %p220
        %p418 = pneg %p244
        %p419 = pneg %p241
        %p420 = pneg %p274
        %p421 = pneg %p271
        %s422 = sand.u32 %s261, 1
        %s423 = scalar_lea.sflag [#allocation8], %s422
        %s424 = sand.u32 %s261, 1
        %s425 = smul.addr %s424, 128
        %s426 = scalar_lea.vmem [#allocation15], %s425
        %p427 = scmp.eq.s32.totalorder %s31, 2
        %s428 = scalar_select %p427, %s32, 0
        %s429 = smul.u32 16, %s428
        %p431 = scmp.lt.s32.totalorder %s31, 2
        %p432 = scmp.eq.s32.totalorder %s32, 0
        %p433 = pnand %p432, %p431
        %p434 = pneg %p433
        // Predicated region
        $region81: #{tpu_custom_call.1} parent=59 // pred_check
          _
        $region82: #{tpu_custom_call.1} parent=59 // pred_check_branch
          %436 = sbr.rel (%p433) target = $region84
        $region83: #{tpu_custom_call.1} parent=59 // pred_region
          %p437 = scmp.eq.s32.totalorder %s31, 0
          // Predicated region
          $region85: #{tpu_custom_call.1} parent=83 // pred_check
            %p438 = pneg %p437
          $region86: #{tpu_custom_call.1} parent=83 // pred_check_branch
            %440 = sbr.rel (%p438) target = $region88
          $region87: #{tpu_custom_call.1} parent=83 // pred_region
            %v441 = vld [vmem:[#allocation6] sm:$0xf]
            %v442 = vld [vmem:[#allocation6 + $0x4] sm:$0xf]
            %v443 = vld [vmem:[#allocation6 + $0x8] sm:$0xf]
            %v444 = vld [vmem:[#allocation6 + $0xc] sm:$0xf]
            %v445 = vld [vmem:[#allocation6 + $0x10] sm:$0xf]
            %v446 = vld [vmem:[#allocation6 + $0x14] sm:$0xf]
            %v447 = vld [vmem:[#allocation6 + $0x18] sm:$0xf]
            %v448 = vld [vmem:[#allocation6 + $0x1c] sm:$0xf]
            %v449 = vld [vmem:[#allocation6 + $0x20] sm:$0xf]
            %v450 = vld [vmem:[#allocation6 + $0x24] sm:$0xf]
            %v451 = vld [vmem:[#allocation6 + $0x28] sm:$0xf]
            %v452 = vld [vmem:[#allocation6 + $0x2c] sm:$0xf]
            %v453 = vld [vmem:[#allocation6 + $0x30] sm:$0xf]
            %v454 = vld [vmem:[#allocation6 + $0x34] sm:$0xf]
            %v455 = vld [vmem:[#allocation6 + $0x38] sm:$0xf]
            %v456 = vld [vmem:[#allocation6 + $0x3c] sm:$0xf]
            %v457 = vld [vmem:[#allocation6 + $0x40] sm:$0xf]
            %v458 = vld [vmem:[#allocation6 + $0x44] sm:$0xf]
            %v459 = vld [vmem:[#allocation6 + $0x48] sm:$0xf]
            %v460 = vld [vmem:[#allocation6 + $0x4c] sm:$0xf]
            %v461 = vld [vmem:[#allocation6 + $0x50] sm:$0xf]
            %v462 = vld [vmem:[#allocation6 + $0x54] sm:$0xf]
            %v463 = vld [vmem:[#allocation6 + $0x58] sm:$0xf]
            %v464 = vld [vmem:[#allocation6 + $0x5c] sm:$0xf]
            %v465 = vld [vmem:[#allocation6 + $0x60] sm:$0xf]
            %v466 = vld [vmem:[#allocation6 + $0x64] sm:$0xf]
            %v467 = vld [vmem:[#allocation6 + $0x68] sm:$0xf]
            %v468 = vld [vmem:[#allocation6 + $0x6c] sm:$0xf]
            %v469 = vld [vmem:[#allocation6 + $0x70] sm:$0xf]
            %v470 = vld [vmem:[#allocation6 + $0x74] sm:$0xf]
            %v471 = vld [vmem:[#allocation6 + $0x78] sm:$0xf]
            %v472 = vld [vmem:[#allocation6 + $0x7c] sm:$0xf]
            %v473 = vld [vmem:[#allocation11] sm:$0xf]
            %v474 = vld [vmem:[#allocation11 + $0x4] sm:$0xf]
            %v475 = vld [vmem:[#allocation11 + $0x8] sm:$0xf]
            %v476 = vld [vmem:[#allocation11 + $0xc] sm:$0xf]
            %v477 = vld [vmem:[#allocation11 + $0x10] sm:$0xf]
            %v478 = vld [vmem:[#allocation11 + $0x14] sm:$0xf]
            %v479 = vld [vmem:[#allocation11 + $0x18] sm:$0xf]
            %v480 = vld [vmem:[#allocation11 + $0x1c] sm:$0xf]
            %v481 = vld [vmem:[#allocation11 + $0x20] sm:$0xf]
            %v482 = vld [vmem:[#allocation11 + $0x24] sm:$0xf]
            %v483 = vld [vmem:[#allocation11 + $0x28] sm:$0xf]
            %v484 = vld [vmem:[#allocation11 + $0x2c] sm:$0xf]
            %v485 = vld [vmem:[#allocation11 + $0x30] sm:$0xf]
            %v486 = vld [vmem:[#allocation11 + $0x34] sm:$0xf]
            %v487 = vld [vmem:[#allocation11 + $0x38] sm:$0xf]
            %v488 = vld [vmem:[#allocation11 + $0x3c] sm:$0xf]
            %v521 = vunpack.c.l.b16 %v441
            %v522 = vunpack.c.l.b16 %v442
            %v523 = vunpack.c.l.b16 %v443
            %v524 = vunpack.c.l.b16 %v444
            %v525 = vunpack.c.l.b16 %v445
            %v526 = vunpack.c.l.b16 %v446
            %v527 = vunpack.c.l.b16 %v447
            %v528 = vunpack.c.l.b16 %v448
            %v529 = vunpack.c.l.b16 %v449
            %v530 = vunpack.c.l.b16 %v450
            %v531 = vunpack.c.l.b16 %v451
            %v532 = vunpack.c.l.b16 %v452
            %v533 = vunpack.c.l.b16 %v453
            %v534 = vunpack.c.l.b16 %v454
            %v535 = vunpack.c.l.b16 %v455
            %v536 = vunpack.c.l.b16 %v456
            %v537 = vunpack.c.l.b16 %v457
            %v538 = vunpack.c.l.b16 %v458
            %v539 = vunpack.c.l.b16 %v459
            %v540 = vunpack.c.l.b16 %v460
            %v541 = vunpack.c.l.b16 %v461
            %v542 = vunpack.c.l.b16 %v462
            %v543 = vunpack.c.l.b16 %v463
            %v544 = vunpack.c.l.b16 %v464
            %v545 = vunpack.c.l.b16 %v465
            %v546 = vunpack.c.l.b16 %v466
            %v547 = vunpack.c.l.b16 %v467
            %v548 = vunpack.c.l.b16 %v468
            %v549 = vunpack.c.l.b16 %v469
            %v550 = vunpack.c.l.b16 %v470
            %v551 = vunpack.c.l.b16 %v471
            %v552 = vunpack.c.l.b16 %v472
            %v553 = vpack.c.b16 %v522, %v521
            %v554 = vpack.c.b16 %v524, %v523
            %v555 = vpack.c.b16 %v526, %v525
            %v556 = vpack.c.b16 %v528, %v527
            %v557 = vpack.c.b16 %v530, %v529
            %v558 = vpack.c.b16 %v532, %v531
            %v559 = vpack.c.b16 %v534, %v533
            %v560 = vpack.c.b16 %v536, %v535
            %v561 = vpack.c.b16 %v538, %v537
            %v562 = vpack.c.b16 %v540, %v539
            %v563 = vpack.c.b16 %v542, %v541
            %v564 = vpack.c.b16 %v544, %v543
            %v565 = vpack.c.b16 %v546, %v545
            %v566 = vpack.c.b16 %v548, %v547
            %v567 = vpack.c.b16 %v550, %v549
            %v568 = vpack.c.b16 %v552, %v551
            %v601 = vunpack.c.l.b16 %v473
            %v602 = vunpack.c.l.b16 %v474
            %v603 = vunpack.c.l.b16 %v475
            %v604 = vunpack.c.l.b16 %v476
            %v605 = vunpack.c.l.b16 %v477
            %v606 = vunpack.c.l.b16 %v478
            %v607 = vunpack.c.l.b16 %v479
            %v608 = vunpack.c.l.b16 %v480
            %v609 = vunpack.c.l.b16 %v481
            %v610 = vunpack.c.l.b16 %v482
            %v611 = vunpack.c.l.b16 %v483
            %v612 = vunpack.c.l.b16 %v484
            %v613 = vunpack.c.l.b16 %v485
            %v614 = vunpack.c.l.b16 %v486
            %v615 = vunpack.c.l.b16 %v487
            %v616 = vunpack.c.l.b16 %v488
            %v617 = vpack.c.b16 %v602, %v601
            %v618 = vpack.c.b16 %v604, %v603
            %v619 = vpack.c.b16 %v606, %v605
            %v620 = vpack.c.b16 %v608, %v607
            %v621 = vpack.c.b16 %v610, %v609
            %v622 = vpack.c.b16 %v612, %v611
            %v623 = vpack.c.b16 %v614, %v613
            %v624 = vpack.c.b16 %v616, %v615
            %633 = vmatprep.subr.bf16.mxu0 0
            %634 = vmatpush1.bf16.msra.mxu0 %v617
            %635 = vmatprep.subr.bf16.mxu0 0
            %636 = vmatpush1.bf16.msra.mxu0 %v618
            %637 = vmatprep.subr.bf16.mxu0 0
            %638 = vmatpush1.bf16.msra.mxu0 %v619
            %639 = vmatprep.subr.bf16.mxu0 0
            %640 = vmatpush1.bf16.msra.mxu0 %v620
            %641 = vmatprep.subr.bf16.mxu0 0
            %642 = vmatpush1.bf16.msra.mxu0 %v621
            %643 = vmatprep.subr.bf16.mxu0 0
            %644 = vmatpush1.bf16.msra.mxu0 %v622
            %645 = vmatprep.subr.bf16.mxu0 0
            %646 = vmatpush1.bf16.msra.mxu0 %v623
            %647 = vmatprep.subr.bf16.mxu0 0
            %648 = vmatpush1.bf16.msra.mxu0 %v624
            %649 = vmatprep.subr.bf16.mxu0 0
            %650 = vmatpush1.bf16.msra.mxu0 0
            %651 = vmatprep.subr.bf16.mxu0 0
            %652 = vmatpush1.bf16.msra.mxu0 0
            %653 = vmatprep.subr.bf16.mxu0 0
            %654 = vmatpush1.bf16.msra.mxu0 0
            %655 = vmatprep.subr.bf16.mxu0 0
            %656 = vmatpush1.bf16.msra.mxu0 0
            %657 = vmatprep.subr.bf16.mxu0 0
            %658 = vmatpush1.bf16.msra.mxu0 0
            %659 = vmatprep.subr.bf16.mxu0 0
            %660 = vmatpush1.bf16.msra.mxu0 0
            %661 = vmatprep.subr.bf16.mxu0 0
            %662 = vmatpush1.bf16.msra.mxu0 0
            %663 = vmatprep.subr.bf16.mxu0 0
            %664 = vmatpush1.bf16.msra.mxu0 0
            %665 = vmatprep.mubr.bf16.mxu0 0
            %666 = vmatmul.mubr.bf16.gmra.mrb[0].mxu0 %v553
            %v667 = vpop.f32.mrb[0].mxu0
            %v668 = vadd.f32 0.0, %v667
            %v669 = vpop.f32.mrb[0].mxu0
            %v670 = vpop.f32.mrb[0].mxu0
            %v671 = vadd.f32 0.0, %v670
            %v672 = vpop.f32.mrb[0].mxu0
            %673 = vmatprep.mubr.bf16.mxu0 0
            %674 = vmatmul.mubr.bf16.gmra.mrb[0].mxu0 %v554
            %v675 = vpop.f32.mrb[0].mxu0
            %v676 = vadd.f32 0.0, %v675
            %v677 = vpop.f32.mrb[0].mxu0
            %v678 = vpop.f32.mrb[0].mxu0
            %v679 = vadd.f32 0.0, %v678
            %v680 = vpop.f32.mrb[0].mxu0
            %681 = vmatprep.mubr.bf16.mxu0 0
            %682 = vmatmul.mubr.bf16.gmra.mrb[0].mxu0 %v555
            %v683 = vpop.f32.mrb[0].mxu0
            %v684 = vadd.f32 0.0, %v683
            %v685 = vpop.f32.mrb[0].mxu0
            %v686 = vpop.f32.mrb[0].mxu0
            %v687 = vadd.f32 0.0, %v686
            %v688 = vpop.f32.mrb[0].mxu0
            %689 = vmatprep.mubr.bf16.mxu0 0
            %690 = vmatmul.mubr.bf16.gmra.mrb[0].mxu0 %v556
            %v691 = vpop.f32.mrb[0].mxu0
            %v692 = vadd.f32 0.0, %v691
            %v693 = vpop.f32.mrb[0].mxu0
            %v694 = vpop.f32.mrb[0].mxu0
            %v695 = vadd.f32 0.0, %v694
            %v696 = vpop.f32.mrb[0].mxu0
            %697 = vmatprep.mubr.bf16.mxu0 0
            %698 = vmatmul.mubr.bf16.gmra.mrb[0].mxu0 %v557
            %v699 = vpop.f32.mrb[0].mxu0
            %v700 = vadd.f32 0.0, %v699
            %v701 = vpop.f32.mrb[0].mxu0
            %v702 = vpop.f32.mrb[0].mxu0
            %v703 = vadd.f32 0.0, %v702
            %v704 = vpop.f32.mrb[0].mxu0
            %705 = vmatprep.mubr.bf16.mxu0 0
            %706 = vmatmul.mubr.bf16.gmra.mrb[0].mxu0 %v558
            %v707 = vpop.f32.mrb[0].mxu0
            %v708 = vadd.f32 0.0, %v707
            %v709 = vpop.f32.mrb[0].mxu0
            %v710 = vpop.f32.mrb[0].mxu0
            %v711 = vadd.f32 0.0, %v710
            %v712 = vpop.f32.mrb[0].mxu0
            %713 = vmatprep.mubr.bf16.mxu0 0
            %714 = vmatmul.mubr.bf16.gmra.mrb[0].mxu0 %v559
            %v715 = vpop.f32.mrb[0].mxu0
            %v716 = vadd.f32 0.0, %v715
            %v717 = vpop.f32.mrb[0].mxu0
            %v718 = vpop.f32.mrb[0].mxu0
            %v719 = vadd.f32 0.0, %v718
            %v720 = vpop.f32.mrb[0].mxu0
            %721 = vmatprep.mubr.bf16.mxu0 0
            %722 = vmatmul.mubr.bf16.gmra.mrb[0].mxu0 %v560
            %v723 = vpop.f32.mrb[0].mxu0
            %v724 = vadd.f32 0.0, %v723
            %v725 = vpop.f32.mrb[0].mxu0
            %v726 = vpop.f32.mrb[0].mxu0
            %v727 = vadd.f32 0.0, %v726
            %v728 = vpop.f32.mrb[0].mxu0
            %729 = vmatprep.mubr.bf16.mxu0 0
            %730 = vmatmul.mubr.bf16.gmra.mrb[0].mxu0 %v561
            %v731 = vpop.f32.mrb[0].mxu0
            %v732 = vadd.f32 0.0, %v731
            %v733 = vpop.f32.mrb[0].mxu0
            %v734 = vpop.f32.mrb[0].mxu0
            %v735 = vadd.f32 0.0, %v734
            %v736 = vpop.f32.mrb[0].mxu0
            %737 = vmatprep.mubr.bf16.mxu0 0
            %738 = vmatmul.mubr.bf16.gmra.mrb[0].mxu0 %v562
            %v739 = vpop.f32.mrb[0].mxu0
            %v740 = vadd.f32 0.0, %v739
            %v741 = vpop.f32.mrb[0].mxu0
            %v742 = vpop.f32.mrb[0].mxu0
            %v743 = vadd.f32 0.0, %v742
            %v744 = vpop.f32.mrb[0].mxu0
            %745 = vmatprep.mubr.bf16.mxu0 0
            %746 = vmatmul.mubr.bf16.gmra.mrb[0].mxu0 %v563
            %v747 = vpop.f32.mrb[0].mxu0
            %v748 = vadd.f32 0.0, %v747
            %v749 = vpop.f32.mrb[0].mxu0
            %v750 = vpop.f32.mrb[0].mxu0
            %v751 = vadd.f32 0.0, %v750
            %v752 = vpop.f32.mrb[0].mxu0
            %753 = vmatprep.mubr.bf16.mxu0 0
            %754 = vmatmul.mubr.bf16.gmra.mrb[0].mxu0 %v564
            %v755 = vpop.f32.mrb[0].mxu0
            %v756 = vadd.f32 0.0, %v755
            %v757 = vpop.f32.mrb[0].mxu0
            %v758 = vpop.f32.mrb[0].mxu0
            %v759 = vadd.f32 0.0, %v758
            %v760 = vpop.f32.mrb[0].mxu0
            %761 = vmatprep.mubr.bf16.mxu0 0
            %762 = vmatmul.mubr.bf16.gmra.mrb[0].mxu0 %v565
            %v763 = vpop.f32.mrb[0].mxu0
            %v764 = vadd.f32 0.0, %v763
            %v765 = vpop.f32.mrb[0].mxu0
            %v766 = vpop.f32.mrb[0].mxu0
            %v767 = vadd.f32 0.0, %v766
            %v768 = vpop.f32.mrb[0].mxu0
            %769 = vmatprep.mubr.bf16.mxu0 0
            %770 = vmatmul.mubr.bf16.gmra.mrb[0].mxu0 %v566
            %v771 = vpop.f32.mrb[0].mxu0
            %v772 = vadd.f32 0.0, %v771
            %v773 = vpop.f32.mrb[0].mxu0
            %v774 = vpop.f32.mrb[0].mxu0
            %v775 = vadd.f32 0.0, %v774
            %v776 = vpop.f32.mrb[0].mxu0
            %777 = vmatprep.mubr.bf16.mxu0 0
            %778 = vmatmul.mubr.bf16.gmra.mrb[0].mxu0 %v567
            %v779 = vpop.f32.mrb[0].mxu0
            %v780 = vadd.f32 0.0, %v779
            %v781 = vpop.f32.mrb[0].mxu0
            %v782 = vpop.f32.mrb[0].mxu0
            %v783 = vadd.f32 0.0, %v782
            %v784 = vpop.f32.mrb[0].mxu0
            %785 = vmatprep.mubr.bf16.mxu0 0
            %786 = vmatmul.mubr.bf16.gmra.mrb[0].mxu0 %v568
            %v787 = vpop.f32.mrb[0].mxu0
            %v788 = vadd.f32 0.0, %v787
            %v789 = vpop.f32.mrb[0].mxu0
            %v790 = vpop.f32.mrb[0].mxu0
            %v791 = vadd.f32 0.0, %v790
            %v792 = vpop.f32.mrb[0].mxu0
            %793 = vdwg.mxu0
            %v794 = vadd.f32 %v668, %v671
            %v795 = vadd.f32 %v794, %v676
            %v796 = vadd.f32 %v795, %v679
            %v797 = vadd.f32 %v796, %v684
            %v798 = vadd.f32 %v797, %v687
            %v799 = vadd.f32 %v798, %v692
            %v800 = vadd.f32 %v799, %v695
            %v801 = vadd.f32 %v800, %v700
            %v802 = vadd.f32 %v801, %v703
            %v803 = vadd.f32 %v802, %v708
            %v804 = vadd.f32 %v803, %v711
            %v805 = vadd.f32 %v804, %v716
            %v806 = vadd.f32 %v805, %v719
            %v807 = vadd.f32 %v806, %v724
            %v808 = vadd.f32 %v807, %v727
            %v809 = vadd.f32 %v808, %v732
            %v810 = vadd.f32 %v809, %v735
            %v811 = vadd.f32 %v810, %v740
            %v812 = vadd.f32 %v811, %v743
            %v813 = vadd.f32 %v812, %v748
            %v814 = vadd.f32 %v813, %v751
            %v815 = vadd.f32 %v814, %v756
            %v816 = vadd.f32 %v815, %v759
            %v817 = vadd.f32 %v816, %v764
            %v818 = vadd.f32 %v817, %v767
            %v819 = vadd.f32 %v818, %v772
            %v820 = vadd.f32 %v819, %v775
            %v821 = vadd.f32 %v820, %v780
            %v822 = vadd.f32 %v821, %v783
            %v823 = vadd.f32 %v822, %v788
            %v824 = vadd.f32 %v823, %v791
            %v825 = vrot.slane %v824, 4
            %v826 = vadd.f32 %v824, %v825
            %v827 = vrot.slane %v826, 2
            %v828 = vadd.f32 %v826, %v827
            %v829 = vrot.slane %v828, 1
            %v830 = vadd.f32 %v828, %v829
            %v831 = vmul.f32 %v668, %v668
            %v832 = vmul.f32 %v671, %v671
            %v833 = vmul.f32 %v676, %v676
            %v834 = vmul.f32 %v679, %v679
            %v835 = vmul.f32 %v684, %v684
            %v836 = vmul.f32 %v687, %v687
            %v837 = vmul.f32 %v692, %v692
            %v838 = vmul.f32 %v695, %v695
            %v839 = vmul.f32 %v700, %v700
            %v840 = vmul.f32 %v703, %v703
            %v841 = vmul.f32 %v708, %v708
            %v842 = vmul.f32 %v711, %v711
            %v843 = vmul.f32 %v716, %v716
            %v844 = vmul.f32 %v719, %v719
            %v845 = vmul.f32 %v724, %v724
            %v846 = vmul.f32 %v727, %v727
            %v847 = vmul.f32 %v732, %v732
            %v848 = vmul.f32 %v735, %v735
            %v849 = vmul.f32 %v740, %v740
            %v850 = vmul.f32 %v743, %v743
            %v851 = vmul.f32 %v748, %v748
            %v852 = vmul.f32 %v751, %v751
            %v853 = vmul.f32 %v756, %v756
            %v854 = vmul.f32 %v759, %v759
            %v855 = vmul.f32 %v764, %v764
            %v856 = vmul.f32 %v767, %v767
            %v857 = vmul.f32 %v772, %v772
            %v858 = vmul.f32 %v775, %v775
            %v859 = vmul.f32 %v780, %v780
            %v860 = vmul.f32 %v783, %v783
            %v861 = vmul.f32 %v788, %v788
            %v862 = vmul.f32 %v791, %v791
            %v863 = vadd.f32 %v831, %v832
            %v864 = vadd.f32 %v863, %v833
            %v865 = vadd.f32 %v864, %v834
            %v866 = vadd.f32 %v865, %v835
            %v867 = vadd.f32 %v866, %v836
            %v868 = vadd.f32 %v867, %v837
            %v869 = vadd.f32 %v868, %v838
            %v870 = vadd.f32 %v869, %v839
            %v871 = vadd.f32 %v870, %v840
            %v872 = vadd.f32 %v871, %v841
            %v873 = vadd.f32 %v872, %v842
            %v874 = vadd.f32 %v873, %v843
            %v875 = vadd.f32 %v874, %v844
            %v876 = vadd.f32 %v875, %v845
            %v877 = vadd.f32 %v876, %v846
            %v878 = vadd.f32 %v877, %v847
            %v879 = vadd.f32 %v878, %v848
            %v880 = vadd.f32 %v879, %v849
            %v881 = vadd.f32 %v880, %v850
            %v882 = vadd.f32 %v881, %v851
            %v883 = vadd.f32 %v882, %v852
            %v884 = vadd.f32 %v883, %v853
            %v885 = vadd.f32 %v884, %v854
            %v886 = vadd.f32 %v885, %v855
            %v887 = vadd.f32 %v886, %v856
            %v888 = vadd.f32 %v887, %v857
            %v889 = vadd.f32 %v888, %v858
            %v890 = vadd.f32 %v889, %v859
            %v891 = vadd.f32 %v890, %v860
            %v892 = vadd.f32 %v891, %v861
            %v893 = vadd.f32 %v892, %v862
            %v894 = vrot.slane %v893, 4
            %v895 = vadd.f32 %v893, %v894
            %v896 = vrot.slane %v895, 2
            %v897 = vadd.f32 %v895, %v896
            %v898 = vrot.slane %v897, 1
            %v899 = vadd.f32 %v897, %v898
            %v900 = vld [vmem:[%s3] sm:$0x1]
            %v901 = vld [vmem:[%s4] sm:$0x1]
            %v902 = vmul.f32 %v830, 0.005
            %v903 = vmul.f32 %v899, 0.005
            %v904 = vmul.f32 %v902, %v902
            %v905 = vsub.f32 %v903, %v904
            %v906 = vmax.f32 %v905, 0.0
            %v907 = vadd.f32 %v906, 1e-05
            %v908 = vrsqrt.pop %v907
            %v909 = vmul.f32 %v908, %v900
            %v910 = vmul.f32 %v902, %v909
            %v911 = vsub.f32 %v901, %v910
            %v912 = vlaneseq
            %v913 = vshrl.u32 %v912, 7
            %v914 = vsub.s32 0, %v913
            %v915 = vrot.slane %v909, %v914
            %v916 = vmul.f32 %v668, %v915
            %v917 = vmul.f32 %v671, %v915
            %v918 = vmul.f32 %v676, %v915
            %v919 = vmul.f32 %v679, %v915
            %v920 = vmul.f32 %v684, %v915
            %v921 = vmul.f32 %v687, %v915
            %v922 = vmul.f32 %v692, %v915
            %v923 = vmul.f32 %v695, %v915
            %v924 = vmul.f32 %v700, %v915
            %v925 = vmul.f32 %v703, %v915
            %v926 = vmul.f32 %v708, %v915
            %v927 = vmul.f32 %v711, %v915
            %v928 = vmul.f32 %v716, %v915
            %v929 = vmul.f32 %v719, %v915
            %v930 = vmul.f32 %v724, %v915
            %v931 = vmul.f32 %v727, %v915
            %v932 = vmul.f32 %v732, %v915
            %v933 = vmul.f32 %v735, %v915
            %v934 = vmul.f32 %v740, %v915
            %v935 = vmul.f32 %v743, %v915
            %v936 = vmul.f32 %v748, %v915
            %v937 = vmul.f32 %v751, %v915
            %v938 = vmul.f32 %v756, %v915
            %v939 = vmul.f32 %v759, %v915
            %v940 = vmul.f32 %v764, %v915
            %v941 = vmul.f32 %v767, %v915
            %v942 = vmul.f32 %v772, %v915
            %v943 = vmul.f32 %v775, %v915
            %v944 = vmul.f32 %v780, %v915
            %v945 = vmul.f32 %v783, %v915
            %v946 = vmul.f32 %v788, %v915
            %v947 = vmul.f32 %v791, %v915
            %v949 = vlaneseq
            %v950 = vshrl.u32 %v949, 7
            %v951 = vsub.s32 0, %v950
            %v952 = vrot.slane %v911, %v951
            %v954 = vadd.f32 %v916, %v952
            %v955 = vadd.f32 %v917, %v952
            %v956 = vadd.f32 %v918, %v952
            %v957 = vadd.f32 %v919, %v952
            %v958 = vadd.f32 %v920, %v952
            %v959 = vadd.f32 %v921, %v952
            %v960 = vadd.f32 %v922, %v952
            %v961 = vadd.f32 %v923, %v952
            %v962 = vadd.f32 %v924, %v952
            %v963 = vadd.f32 %v925, %v952
            %v964 = vadd.f32 %v926, %v952
            %v965 = vadd.f32 %v927, %v952
            %v966 = vadd.f32 %v928, %v952
            %v967 = vadd.f32 %v929, %v952
            %v968 = vadd.f32 %v930, %v952
            %v969 = vadd.f32 %v931, %v952
            %v970 = vadd.f32 %v932, %v952
            %v971 = vadd.f32 %v933, %v952
            %v972 = vadd.f32 %v934, %v952
            %v973 = vadd.f32 %v935, %v952
            %v974 = vadd.f32 %v936, %v952
            %v975 = vadd.f32 %v937, %v952
            %v976 = vadd.f32 %v938, %v952
            %v977 = vadd.f32 %v939, %v952
            %v978 = vadd.f32 %v940, %v952
            %v979 = vadd.f32 %v941, %v952
            %v980 = vadd.f32 %v942, %v952
            %v981 = vadd.f32 %v943, %v952
            %v982 = vadd.f32 %v944, %v952
            %v983 = vadd.f32 %v945, %v952
            %v984 = vadd.f32 %v946, %v952
            %v985 = vadd.f32 %v947, %v952
            %v986 = vpack.c.bf16 %v955, %v954
            %v987 = vpack.c.bf16 %v957, %v956
            %v988 = vpack.c.bf16 %v959, %v958
            %v989 = vpack.c.bf16 %v961, %v960
            %v990 = vpack.c.bf16 %v963, %v962
            %v991 = vpack.c.bf16 %v965, %v964
            %v992 = vpack.c.bf16 %v967, %v966
            %v993 = vpack.c.bf16 %v969, %v968
            %v994 = vpack.c.bf16 %v971, %v970
            %v995 = vpack.c.bf16 %v973, %v972
            %v996 = vpack.c.bf16 %v975, %v974
            %v997 = vpack.c.bf16 %v977, %v976
            %v998 = vpack.c.bf16 %v979, %v978
            %v999 = vpack.c.bf16 %v981, %v980
            %v1000 = vpack.c.bf16 %v983, %v982
            %v1001 = vpack.c.bf16 %v985, %v984
            %s1002 = smul.u32 %s31, 16
            %s1003 = smul.addr %s1002, 4
            %s1004 = scalar_lea.vmem [#allocation12], %s1003
            %v1005 = vld [vmem:[%s1004] sm:$0xf]
            %v1006 = vld [vmem:[%s1004 + $0x4] sm:$0xf]
            %v1007 = vld [vmem:[%s1004 + $0x8] sm:$0xf]
            %v1008 = vld [vmem:[%s1004 + $0xc] sm:$0xf]
            %v1009 = vld [vmem:[%s1004 + $0x10] sm:$0xf]
            %v1010 = vld [vmem:[%s1004 + $0x14] sm:$0xf]
            %v1011 = vld [vmem:[%s1004 + $0x18] sm:$0xf]
            %v1012 = vld [vmem:[%s1004 + $0x1c] sm:$0xf]
            %v1013 = vld [vmem:[%s1004 + $0x20] sm:$0xf]
            %v1014 = vld [vmem:[%s1004 + $0x24] sm:$0xf]
            %v1015 = vld [vmem:[%s1004 + $0x28] sm:$0xf]
            %v1016 = vld [vmem:[%s1004 + $0x2c] sm:$0xf]
            %v1017 = vld [vmem:[%s1004 + $0x30] sm:$0xf]
            %v1018 = vld [vmem:[%s1004 + $0x34] sm:$0xf]
            %v1019 = vld [vmem:[%s1004 + $0x38] sm:$0xf]
            %v1020 = vld [vmem:[%s1004 + $0x3c] sm:$0xf]
            %v1037 = vunpack.c.l.b16 %v1005
            %v1038 = vunpack.c.l.b16 %v1006
            %v1039 = vunpack.c.l.b16 %v1007
            %v1040 = vunpack.c.l.b16 %v1008
            %v1041 = vunpack.c.l.b16 %v1009
            %v1042 = vunpack.c.l.b16 %v1010
            %v1043 = vunpack.c.l.b16 %v1011
            %v1044 = vunpack.c.l.b16 %v1012
            %v1045 = vunpack.c.l.b16 %v1013
            %v1046 = vunpack.c.l.b16 %v1014
            %v1047 = vunpack.c.l.b16 %v1015
            %v1048 = vunpack.c.l.b16 %v1016
            %v1049 = vunpack.c.l.b16 %v1017
            %v1050 = vunpack.c.l.b16 %v1018
            %v1051 = vunpack.c.l.b16 %v1019
            %v1052 = vunpack.c.l.b16 %v1020
            %v1053 = vpack.c.b16 %v1038, %v1037
            %v1054 = vpack.c.b16 %v1040, %v1039
            %v1055 = vpack.c.b16 %v1042, %v1041
            %v1056 = vpack.c.b16 %v1044, %v1043
            %v1057 = vpack.c.b16 %v1046, %v1045
            %v1058 = vpack.c.b16 %v1048, %v1047
            %v1059 = vpack.c.b16 %v1050, %v1049
            %v1060 = vpack.c.b16 %v1052, %v1051
            %1069 = vmatprep.subr.bf16.mxu0 0
            %1070 = vmatpush1.bf16.msra.mxu0 %v1053
            %1071 = vmatprep.subr.bf16.mxu0 0
            %1072 = vmatpush1.bf16.msra.mxu0 %v1054
            %1073 = vmatprep.subr.bf16.mxu0 0
            %1074 = vmatpush1.bf16.msra.mxu0 %v1055
            %1075 = vmatprep.subr.bf16.mxu0 0
            %1076 = vmatpush1.bf16.msra.mxu0 %v1056
            %1077 = vmatprep.subr.bf16.mxu0 0
            %1078 = vmatpush1.bf16.msra.mxu0 %v1057
            %1079 = vmatprep.subr.bf16.mxu0 0
            %1080 = vmatpush1.bf16.msra.mxu0 %v1058
            %1081 = vmatprep.subr.bf16.mxu0 0
            %1082 = vmatpush1.bf16.msra.mxu0 %v1059
            %1083 = vmatprep.subr.bf16.mxu0 0
            %1084 = vmatpush1.bf16.msra.mxu0 %v1060
            %1085 = vmatprep.subr.bf16.mxu0 0
            %1086 = vmatpush1.bf16.msra.mxu0 0
            %1087 = vmatprep.subr.bf16.mxu0 0
            %1088 = vmatpush1.bf16.msra.mxu0 0
            %1089 = vmatprep.subr.bf16.mxu0 0
            %1090 = vmatpush1.bf16.msra.mxu0 0
            %1091 = vmatprep.subr.bf16.mxu0 0
            %1092 = vmatpush1.bf16.msra.mxu0 0
            %1093 = vmatprep.subr.bf16.mxu0 0
            %1094 = vmatpush1.bf16.msra.mxu0 0
            %1095 = vmatprep.subr.bf16.mxu0 0
            %1096 = vmatpush1.bf16.msra.mxu0 0
            %1097 = vmatprep.subr.bf16.mxu0 0
            %1098 = vmatpush1.bf16.msra.mxu0 0
            %1099 = vmatprep.subr.bf16.mxu0 0
            %1100 = vmatpush1.bf16.msra.mxu0 0
            %1101 = vmatprep.mubr.bf16.mxu0 0
            %1102 = vmatmul.mubr.bf16.gmra.mrb[0].mxu0 %v986
            %v1103 = vpop.f32.mrb[0].mxu0
            %v1104 = vadd.f32 0.0, %v1103
            %v1105 = vpop.f32.mrb[0].mxu0
            %v1106 = vpop.f32.mrb[0].mxu0
            %v1107 = vadd.f32 0.0, %v1106
            %v1108 = vpop.f32.mrb[0].mxu0
            %1109 = vmatprep.mubr.bf16.mxu0 0
            %1110 = vmatmul.mubr.bf16.gmra.mrb[0].mxu0 %v987
            %v1111 = vpop.f32.mrb[0].mxu0
            %v1112 = vadd.f32 0.0, %v1111
            %v1113 = vpop.f32.mrb[0].mxu0
            %v1114 = vpop.f32.mrb[0].mxu0
            %v1115 = vadd.f32 0.0, %v1114
            %v1116 = vpop.f32.mrb[0].mxu0
            %1117 = vmatprep.mubr.bf16.mxu0 0
            %1118 = vmatmul.mubr.bf16.gmra.mrb[0].mxu0 %v988
            %v1119 = vpop.f32.mrb[0].mxu0
            %v1120 = vadd.f32 0.0, %v1119
            %v1121 = vpop.f32.mrb[0].mxu0
            %v1122 = vpop.f32.mrb[0].mxu0
            %v1123 = vadd.f32 0.0, %v1122
            %v1124 = vpop.f32.mrb[0].mxu0
            %1125 = vmatprep.mubr.bf16.mxu0 0
            %1126 = vmatmul.mubr.bf16.gmra.mrb[0].mxu0 %v989
            %v1127 = vpop.f32.mrb[0].mxu0
            %v1128 = vadd.f32 0.0, %v1127
            %v1129 = vpop.f32.mrb[0].mxu0
            %v1130 = vpop.f32.mrb[0].mxu0
            %v1131 = vadd.f32 0.0, %v1130
            %v1132 = vpop.f32.mrb[0].mxu0
            %1133 = vmatprep.mubr.bf16.mxu0 0
            %1134 = vmatmul.mubr.bf16.gmra.mrb[0].mxu0 %v990
            %v1135 = vpop.f32.mrb[0].mxu0
            %v1136 = vadd.f32 0.0, %v1135
            %v1137 = vpop.f32.mrb[0].mxu0
            %v1138 = vpop.f32.mrb[0].mxu0
            %v1139 = vadd.f32 0.0, %v1138
            %v1140 = vpop.f32.mrb[0].mxu0
            %1141 = vmatprep.mubr.bf16.mxu0 0
            %1142 = vmatmul.mubr.bf16.gmra.mrb[0].mxu0 %v991
            %v1143 = vpop.f32.mrb[0].mxu0
            %v1144 = vadd.f32 0.0, %v1143
            %v1145 = vpop.f32.mrb[0].mxu0
            %v1146 = vpop.f32.mrb[0].mxu0
            %v1147 = vadd.f32 0.0, %v1146
            %v1148 = vpop.f32.mrb[0].mxu0
            %1149 = vmatprep.mubr.bf16.mxu0 0
            %1150 = vmatmul.mubr.bf16.gmra.mrb[0].mxu0 %v992
            %v1151 = vpop.f32.mrb[0].mxu0
            %v1152 = vadd.f32 0.0, %v1151
            %v1153 = vpop.f32.mrb[0].mxu0
            %v1154 = vpop.f32.mrb[0].mxu0
            %v1155 = vadd.f32 0.0, %v1154
            %v1156 = vpop.f32.mrb[0].mxu0
            %1157 = vmatprep.mubr.bf16.mxu0 0
            %1158 = vmatmul.mubr.bf16.gmra.mrb[0].mxu0 %v993
            %v1159 = vpop.f32.mrb[0].mxu0
            %v1160 = vadd.f32 0.0, %v1159
            %v1161 = vpop.f32.mrb[0].mxu0
            %v1162 = vpop.f32.mrb[0].mxu0
            %v1163 = vadd.f32 0.0, %v1162
            %v1164 = vpop.f32.mrb[0].mxu0
            %1165 = vmatprep.mubr.bf16.mxu0 0
            %1166 = vmatmul.mubr.bf16.gmra.mrb[0].mxu0 %v994
            %v1167 = vpop.f32.mrb[0].mxu0
            %v1168 = vadd.f32 0.0, %v1167
            %v1169 = vpop.f32.mrb[0].mxu0
            %v1170 = vpop.f32.mrb[0].mxu0
            %v1171 = vadd.f32 0.0, %v1170
            %v1172 = vpop.f32.mrb[0].mxu0
            %1173 = vmatprep.mubr.bf16.mxu0 0
            %1174 = vmatmul.mubr.bf16.gmra.mrb[0].mxu0 %v995
            %v1175 = vpop.f32.mrb[0].mxu0
            %v1176 = vadd.f32 0.0, %v1175
            %v1177 = vpop.f32.mrb[0].mxu0
            %v1178 = vpop.f32.mrb[0].mxu0
            %v1179 = vadd.f32 0.0, %v1178
            %v1180 = vpop.f32.mrb[0].mxu0
            %1181 = vmatprep.mubr.bf16.mxu0 0
            %1182 = vmatmul.mubr.bf16.gmra.mrb[0].mxu0 %v996
            %v1183 = vpop.f32.mrb[0].mxu0
            %v1184 = vadd.f32 0.0, %v1183
            %v1185 = vpop.f32.mrb[0].mxu0
            %v1186 = vpop.f32.mrb[0].mxu0
            %v1187 = vadd.f32 0.0, %v1186
            %v1188 = vpop.f32.mrb[0].mxu0
            %1189 = vmatprep.mubr.bf16.mxu0 0
            %1190 = vmatmul.mubr.bf16.gmra.mrb[0].mxu0 %v997
            %v1191 = vpop.f32.mrb[0].mxu0
            %v1192 = vadd.f32 0.0, %v1191
            %v1193 = vpop.f32.mrb[0].mxu0
            %v1194 = vpop.f32.mrb[0].mxu0
            %v1195 = vadd.f32 0.0, %v1194
            %v1196 = vpop.f32.mrb[0].mxu0
            %1197 = vmatprep.mubr.bf16.mxu0 0
            %1198 = vmatmul.mubr.bf16.gmra.mrb[0].mxu0 %v998
            %v1199 = vpop.f32.mrb[0].mxu0
            %v1200 = vadd.f32 0.0, %v1199
            %v1201 = vpop.f32.mrb[0].mxu0
            %v1202 = vpop.f32.mrb[0].mxu0
            %v1203 = vadd.f32 0.0, %v1202
            %v1204 = vpop.f32.mrb[0].mxu0
            %1205 = vmatprep.mubr.bf16.mxu0 0
            %1206 = vmatmul.mubr.bf16.gmra.mrb[0].mxu0 %v999
            %v1207 = vpop.f32.mrb[0].mxu0
            %v1208 = vadd.f32 0.0, %v1207
            %v1209 = vpop.f32.mrb[0].mxu0
            %v1210 = vpop.f32.mrb[0].mxu0
            %v1211 = vadd.f32 0.0, %v1210
            %v1212 = vpop.f32.mrb[0].mxu0
            %1213 = vmatprep.mubr.bf16.mxu0 0
            %1214 = vmatmul.mubr.bf16.gmra.mrb[0].mxu0 %v1000
            %v1215 = vpop.f32.mrb[0].mxu0
            %v1216 = vadd.f32 0.0, %v1215
            %v1217 = vpop.f32.mrb[0].mxu0
            %v1218 = vpop.f32.mrb[0].mxu0
            %v1219 = vadd.f32 0.0, %v1218
            %v1220 = vpop.f32.mrb[0].mxu0
            %1221 = vmatprep.mubr.bf16.mxu0 0
            %1222 = vmatmul.mubr.bf16.gmra.mrb[0].mxu0 %v1001
            %v1223 = vpop.f32.mrb[0].mxu0
            %v1224 = vadd.f32 0.0, %v1223
            %v1225 = vpop.f32.mrb[0].mxu0
            %v1226 = vpop.f32.mrb[0].mxu0
            %v1227 = vadd.f32 0.0, %v1226
            %v1228 = vpop.f32.mrb[0].mxu0
            %1229 = vdwg.mxu0
            %v1230 = vpack.c.bf16 %v1107, %v1104
            %v1231 = vpack.c.bf16 %v1115, %v1112
            %v1232 = vpack.c.bf16 %v1123, %v1120
            %v1233 = vpack.c.bf16 %v1131, %v1128
            %v1234 = vpack.c.bf16 %v1139, %v1136
            %v1235 = vpack.c.bf16 %v1147, %v1144
            %v1236 = vpack.c.bf16 %v1155, %v1152
            %v1237 = vpack.c.bf16 %v1163, %v1160
            %v1238 = vpack.c.bf16 %v1171, %v1168
            %v1239 = vpack.c.bf16 %v1179, %v1176
            %v1240 = vpack.c.bf16 %v1187, %v1184
            %v1241 = vpack.c.bf16 %v1195, %v1192
            %v1242 = vpack.c.bf16 %v1203, %v1200
            %v1243 = vpack.c.bf16 %v1211, %v1208
            %v1244 = vpack.c.bf16 %v1219, %v1216
            %v1245 = vpack.c.bf16 %v1227, %v1224
            %1246 = vst [vmem:[#allocation2] sm:$0xff] %v1230
            %1247 = vst [vmem:[#allocation2 + $0x8] sm:$0xff] %v1231
            %1248 = vst [vmem:[#allocation2 + $0x10] sm:$0xff] %v1232
            %1249 = vst [vmem:[#allocation2 + $0x18] sm:$0xff] %v1233
            %1250 = vst [vmem:[#allocation2 + $0x20] sm:$0xff] %v1234
            %1251 = vst [vmem:[#allocation2 + $0x28] sm:$0xff] %v1235
            %1252 = vst [vmem:[#allocation2 + $0x30] sm:$0xff] %v1236
            %1253 = vst [vmem:[#allocation2 + $0x38] sm:$0xff] %v1237
            %1254 = vst [vmem:[#allocation2 + $0x40] sm:$0xff] %v1238
            %1255 = vst [vmem:[#allocation2 + $0x48] sm:$0xff] %v1239
            %1256 = vst [vmem:[#allocation2 + $0x50] sm:$0xff] %v1240
            %1257 = vst [vmem:[#allocation2 + $0x58] sm:$0xff] %v1241
            %1258 = vst [vmem:[#allocation2 + $0x60] sm:$0xff] %v1242
            %1259 = vst [vmem:[#allocation2 + $0x68] sm:$0xff] %v1243
            %1260 = vst [vmem:[#allocation2 + $0x70] sm:$0xff] %v1244
            %1261 = vst [vmem:[#allocation2 + $0x78] sm:$0xff] %v1245
          $region88: #{tpu_custom_call.1} parent=83 // pred_fallthru
            _
          %p1262 = scmp.gt.s32.totalorder %s31, 0
          // Predicated region
          $region89: #{tpu_custom_call.1} parent=83 // pred_check
            %p1263 = pneg %p1262
          $region90: #{tpu_custom_call.1} parent=83 // pred_check_branch
            %1265 = sbr.rel (%p1263) target = $region92
          $region91: #{tpu_custom_call.1} parent=83 // pred_region
            %v1266 = vld [vmem:[#allocation4] sm:$0x1]
            %v1267 = vld [vmem:[#allocation5] sm:$0x1]
            %s1268 = ssub.s32 %s31, 1
            %s1269 = scalar_lea.vmem %s6, %s1268
            %v1270 = vld [vmem:[%s1269] sm:$0x1]
            %s1271 = scalar_lea.vmem %s7, %s1268
            %v1272 = vld [vmem:[%s1271] sm:$0x1]
            %v1273 = vmul.f32 %v1266, 0.005
            %v1274 = vmul.f32 %v1267, 0.005
            %v1275 = vmul.f32 %v1273, %v1273
            %v1276 = vsub.f32 %v1274, %v1275
            %v1277 = vmax.f32 %v1276, 0.0
            %v1278 = vadd.f32 %v1277, 1e-05
            %v1279 = vrsqrt.pop %v1278
            %v1280 = vmul.f32 %v1279, %v1270
            %v1281 = vmul.f32 %v1273, %v1280
            %v1282 = vsub.f32 %v1272, %v1281
            %v1283 = vld [vmem:[#allocation3] sm:$0xff]
            %v1284 = vld [vmem:[#allocation3 + $0x8] sm:$0xff]
            %v1285 = vld [vmem:[#allocation3 + $0x10] sm:$0xff]
            %v1286 = vld [vmem:[#allocation3 + $0x18] sm:$0xff]
            %v1287 = vld [vmem:[#allocation3 + $0x20] sm:$0xff]
            %v1288 = vld [vmem:[#allocation3 + $0x28] sm:$0xff]
            %v1289 = vld [vmem:[#allocation3 + $0x30] sm:$0xff]
            %v1290 = vld [vmem:[#allocation3 + $0x38] sm:$0xff]
            %v1291 = vld [vmem:[#allocation3 + $0x40] sm:$0xff]
            %v1292 = vld [vmem:[#allocation3 + $0x48] sm:$0xff]
            %v1293 = vld [vmem:[#allocation3 + $0x50] sm:$0xff]
            %v1294 = vld [vmem:[#allocation3 + $0x58] sm:$0xff]
            %v1295 = vld [vmem:[#allocation3 + $0x60] sm:$0xff]
            %v1296 = vld [vmem:[#allocation3 + $0x68] sm:$0xff]
            %v1297 = vld [vmem:[#allocation3 + $0x70] sm:$0xff]
            %v1298 = vld [vmem:[#allocation3 + $0x78] sm:$0xff]
            %v1299 = vld [vmem:[#allocation3 + $0x80] sm:$0xff]
            %v1300 = vld [vmem:[#allocation3 + $0x88] sm:$0xff]
            %v1301 = vld [vmem:[#allocation3 + $0x90] sm:$0xff]
            %v1302 = vld [vmem:[#allocation3 + $0x98] sm:$0xff]
            %v1303 = vld [vmem:[#allocation3 + $0xa0] sm:$0xff]
            %v1304 = vld [vmem:[#allocation3 + $0xa8] sm:$0xff]
            %v1305 = vld [vmem:[#allocation3 + $0xb0] sm:$0xff]
            %v1306 = vld [vmem:[#allocation3 + $0xb8] sm:$0xff]
            %v1307 = vld [vmem:[#allocation3 + $0xc0] sm:$0xff]
            %v1308 = vld [vmem:[#allocation3 + $0xc8] sm:$0xff]
            %v1309 = vld [vmem:[#allocation3 + $0xd0] sm:$0xff]
            %v1310 = vld [vmem:[#allocation3 + $0xd8] sm:$0xff]
            %v1311 = vld [vmem:[#allocation3 + $0xe0] sm:$0xff]
            %v1312 = vld [vmem:[#allocation3 + $0xe8] sm:$0xff]
            %v1313 = vld [vmem:[#allocation3 + $0xf0] sm:$0xff]
            %v1314 = vld [vmem:[#allocation3 + $0xf8] sm:$0xff]
            %v1316 = vlaneseq
            %v1317 = vshrl.u32 %v1316, 7
            %v1318 = vsub.s32 0, %v1317
            %v1319 = vrot.slane %v1280, %v1318
            %v1321 = vmul.f32 %v1283, %v1319
            %v1322 = vmul.f32 %v1284, %v1319
            %v1323 = vmul.f32 %v1285, %v1319
            %v1324 = vmul.f32 %v1286, %v1319
            %v1325 = vmul.f32 %v1287, %v1319
            %v1326 = vmul.f32 %v1288, %v1319
            %v1327 = vmul.f32 %v1289, %v1319
            %v1328 = vmul.f32 %v1290, %v1319
            %v1329 = vmul.f32 %v1291, %v1319
            %v1330 = vmul.f32 %v1292, %v1319
            %v1331 = vmul.f32 %v1293, %v1319
            %v1332 = vmul.f32 %v1294, %v1319
            %v1333 = vmul.f32 %v1295, %v1319
            %v1334 = vmul.f32 %v1296, %v1319
            %v1335 = vmul.f32 %v1297, %v1319
            %v1336 = vmul.f32 %v1298, %v1319
            %v1337 = vmul.f32 %v1299, %v1319
            %v1338 = vmul.f32 %v1300, %v1319
            %v1339 = vmul.f32 %v1301, %v1319
            %v1340 = vmul.f32 %v1302, %v1319
            %v1341 = vmul.f32 %v1303, %v1319
            %v1342 = vmul.f32 %v1304, %v1319
            %v1343 = vmul.f32 %v1305, %v1319
            %v1344 = vmul.f32 %v1306, %v1319
            %v1345 = vmul.f32 %v1307, %v1319
            %v1346 = vmul.f32 %v1308, %v1319
            %v1347 = vmul.f32 %v1309, %v1319
            %v1348 = vmul.f32 %v1310, %v1319
            %v1349 = vmul.f32 %v1311, %v1319
            %v1350 = vmul.f32 %v1312, %v1319
            %v1351 = vmul.f32 %v1313, %v1319
            %v1352 = vmul.f32 %v1314, %v1319
            %v1354 = vlaneseq
            %v1355 = vshrl.u32 %v1354, 7
            %v1356 = vsub.s32 0, %v1355
            %v1357 = vrot.slane %v1282, %v1356
            %v1359 = vadd.f32 %v1321, %v1357
            %v1360 = vadd.f32 %v1322, %v1357
            %v1361 = vadd.f32 %v1323, %v1357
            %v1362 = vadd.f32 %v1324, %v1357
            %v1363 = vadd.f32 %v1325, %v1357
            %v1364 = vadd.f32 %v1326, %v1357
            %v1365 = vadd.f32 %v1327, %v1357
            %v1366 = vadd.f32 %v1328, %v1357
            %v1367 = vadd.f32 %v1329, %v1357
            %v1368 = vadd.f32 %v1330, %v1357
            %v1369 = vadd.f32 %v1331, %v1357
            %v1370 = vadd.f32 %v1332, %v1357
            %v1371 = vadd.f32 %v1333, %v1357
            %v1372 = vadd.f32 %v1334, %v1357
            %v1373 = vadd.f32 %v1335, %v1357
            %v1374 = vadd.f32 %v1336, %v1357
            %v1375 = vadd.f32 %v1337, %v1357
            %v1376 = vadd.f32 %v1338, %v1357
            %v1377 = vadd.f32 %v1339, %v1357
            %v1378 = vadd.f32 %v1340, %v1357
            %v1379 = vadd.f32 %v1341, %v1357
            %v1380 = vadd.f32 %v1342, %v1357
            %v1381 = vadd.f32 %v1343, %v1357
            %v1382 = vadd.f32 %v1344, %v1357
            %v1383 = vadd.f32 %v1345, %v1357
            %v1384 = vadd.f32 %v1346, %v1357
            %v1385 = vadd.f32 %v1347, %v1357
            %v1386 = vadd.f32 %v1348, %v1357
            %v1387 = vadd.f32 %v1349, %v1357
            %v1388 = vadd.f32 %v1350, %v1357
            %v1389 = vadd.f32 %v1351, %v1357
            %v1390 = vadd.f32 %v1352, %v1357
            %v1391 = vmax.f32 %v1359, 0.0
            %v1392 = vmax.f32 %v1360, 0.0
            %v1393 = vmax.f32 %v1361, 0.0
            %v1394 = vmax.f32 %v1362, 0.0
            %v1395 = vmax.f32 %v1363, 0.0
            %v1396 = vmax.f32 %v1364, 0.0
            %v1397 = vmax.f32 %v1365, 0.0
            %v1398 = vmax.f32 %v1366, 0.0
            %v1399 = vmax.f32 %v1367, 0.0
            %v1400 = vmax.f32 %v1368, 0.0
            %v1401 = vmax.f32 %v1369, 0.0
            %v1402 = vmax.f32 %v1370, 0.0
            %v1403 = vmax.f32 %v1371, 0.0
            %v1404 = vmax.f32 %v1372, 0.0
            %v1405 = vmax.f32 %v1373, 0.0
            %v1406 = vmax.f32 %v1374, 0.0
            %v1407 = vmax.f32 %v1375, 0.0
            %v1408 = vmax.f32 %v1376, 0.0
            %v1409 = vmax.f32 %v1377, 0.0
            %v1410 = vmax.f32 %v1378, 0.0
            %v1411 = vmax.f32 %v1379, 0.0
            %v1412 = vmax.f32 %v1380, 0.0
            %v1413 = vmax.f32 %v1381, 0.0
            %v1414 = vmax.f32 %v1382, 0.0
            %v1415 = vmax.f32 %v1383, 0.0
            %v1416 = vmax.f32 %v1384, 0.0
            %v1417 = vmax.f32 %v1385, 0.0
            %v1418 = vmax.f32 %v1386, 0.0
            %v1419 = vmax.f32 %v1387, 0.0
            %v1420 = vmax.f32 %v1388, 0.0
            %v1421 = vmax.f32 %v1389, 0.0
            %v1422 = vmax.f32 %v1390, 0.0
            %v1423 = vpack.c.bf16 %v1392, %v1391
            %v1424 = vpack.c.bf16 %v1394, %v1393
            %v1425 = vpack.c.bf16 %v1396, %v1395
            %v1426 = vpack.c.bf16 %v1398, %v1397
            %v1427 = vpack.c.bf16 %v1400, %v1399
            %v1428 = vpack.c.bf16 %v1402, %v1401
            %v1429 = vpack.c.bf16 %v1404, %v1403
            %v1430 = vpack.c.bf16 %v1406, %v1405
            %v1431 = vpack.c.bf16 %v1408, %v1407
            %v1432 = vpack.c.bf16 %v1410, %v1409
            %v1433 = vpack.c.bf16 %v1412, %v1411
            %v1434 = vpack.c.bf16 %v1414, %v1413
            %v1435 = vpack.c.bf16 %v1416, %v1415
            %v1436 = vpack.c.bf16 %v1418, %v1417
            %v1437 = vpack.c.bf16 %v1420, %v1419
            %v1438 = vpack.c.bf16 %v1422, %v1421
            %s1439 = smul.u32 %s31, 16
            %s1440 = smul.addr %s1439, 4
            %s1441 = scalar_lea.vmem [#allocation12], %s1440
            %v1442 = vld [vmem:[%s1441] sm:$0xf]
            %v1443 = vld [vmem:[%s1441 + $0x4] sm:$0xf]
            %v1444 = vld [vmem:[%s1441 + $0x8] sm:$0xf]
            %v1445 = vld [vmem:[%s1441 + $0xc] sm:$0xf]
            %v1446 = vld [vmem:[%s1441 + $0x10] sm:$0xf]
            %v1447 = vld [vmem:[%s1441 + $0x14] sm:$0xf]
            %v1448 = vld [vmem:[%s1441 + $0x18] sm:$0xf]
            %v1449 = vld [vmem:[%s1441 + $0x1c] sm:$0xf]
            %v1450 = vld [vmem:[%s1441 + $0x20] sm:$0xf]
            %v1451 = vld [vmem:[%s1441 + $0x24] sm:$0xf]
            %v1452 = vld [vmem:[%s1441 + $0x28] sm:$0xf]
            %v1453 = vld [vmem:[%s1441 + $0x2c] sm:$0xf]
            %v1454 = vld [vmem:[%s1441 + $0x30] sm:$0xf]
            %v1455 = vld [vmem:[%s1441 + $0x34] sm:$0xf]
            %v1456 = vld [vmem:[%s1441 + $0x38] sm:$0xf]
            %v1457 = vld [vmem:[%s1441 + $0x3c] sm:$0xf]
            %v1474 = vunpack.c.l.b16 %v1442
            %v1475 = vunpack.c.l.b16 %v1443
            %v1476 = vunpack.c.l.b16 %v1444
            %v1477 = vunpack.c.l.b16 %v1445
            %v1478 = vunpack.c.l.b16 %v1446
            %v1479 = vunpack.c.l.b16 %v1447
            %v1480 = vunpack.c.l.b16 %v1448
            %v1481 = vunpack.c.l.b16 %v1449
            %v1482 = vunpack.c.l.b16 %v1450
            %v1483 = vunpack.c.l.b16 %v1451
            %v1484 = vunpack.c.l.b16 %v1452
            %v1485 = vunpack.c.l.b16 %v1453
            %v1486 = vunpack.c.l.b16 %v1454
            %v1487 = vunpack.c.l.b16 %v1455
            %v1488 = vunpack.c.l.b16 %v1456
            %v1489 = vunpack.c.l.b16 %v1457
            %v1490 = vpack.c.b16 %v1475, %v1474
            %v1491 = vpack.c.b16 %v1477, %v1476
            %v1492 = vpack.c.b16 %v1479, %v1478
            %v1493 = vpack.c.b16 %v1481, %v1480
            %v1494 = vpack.c.b16 %v1483, %v1482
            %v1495 = vpack.c.b16 %v1485, %v1484
            %v1496 = vpack.c.b16 %v1487, %v1486
            %v1497 = vpack.c.b16 %v1489, %v1488
            %1506 = vmatprep.subr.bf16.mxu0 0
            %1507 = vmatpush1.bf16.msra.mxu0 %v1490
            %1508 = vmatprep.subr.bf16.mxu0 0
            %1509 = vmatpush1.bf16.msra.mxu0 %v1491
            %1510 = vmatprep.subr.bf16.mxu0 0
            %1511 = vmatpush1.bf16.msra.mxu0 %v1492
            %1512 = vmatprep.subr.bf16.mxu0 0
            %1513 = vmatpush1.bf16.msra.mxu0 %v1493
            %1514 = vmatprep.subr.bf16.mxu0 0
            %1515 = vmatpush1.bf16.msra.mxu0 %v1494
            %1516 = vmatprep.subr.bf16.mxu0 0
            %1517 = vmatpush1.bf16.msra.mxu0 %v1495
            %1518 = vmatprep.subr.bf16.mxu0 0
            %1519 = vmatpush1.bf16.msra.mxu0 %v1496
            %1520 = vmatprep.subr.bf16.mxu0 0
            %1521 = vmatpush1.bf16.msra.mxu0 %v1497
            %1522 = vmatprep.subr.bf16.mxu0 0
            %1523 = vmatpush1.bf16.msra.mxu0 0
            %1524 = vmatprep.subr.bf16.mxu0 0
            %1525 = vmatpush1.bf16.msra.mxu0 0
            %1526 = vmatprep.subr.bf16.mxu0 0
            %1527 = vmatpush1.bf16.msra.mxu0 0
            %1528 = vmatprep.subr.bf16.mxu0 0
            %1529 = vmatpush1.bf16.msra.mxu0 0
            %1530 = vmatprep.subr.bf16.mxu0 0
            %1531 = vmatpush1.bf16.msra.mxu0 0
            %1532 = vmatprep.subr.bf16.mxu0 0
            %1533 = vmatpush1.bf16.msra.mxu0 0
            %1534 = vmatprep.subr.bf16.mxu0 0
            %1535 = vmatpush1.bf16.msra.mxu0 0
            %1536 = vmatprep.subr.bf16.mxu0 0
            %1537 = vmatpush1.bf16.msra.mxu0 0
            %1538 = vmatprep.mubr.bf16.mxu0 0
            %1539 = vmatmul.mubr.bf16.gmra.mrb[0].mxu0 %v1423
            %v1540 = vpop.f32.mrb[0].mxu0
            %v1541 = vadd.f32 0.0, %v1540
            %v1542 = vpop.f32.mrb[0].mxu0
            %v1543 = vpop.f32.mrb[0].mxu0
            %v1544 = vadd.f32 0.0, %v1543
            %v1545 = vpop.f32.mrb[0].mxu0
            %1546 = vmatprep.mubr.bf16.mxu0 0
            %1547 = vmatmul.mubr.bf16.gmra.mrb[0].mxu0 %v1424
            %v1548 = vpop.f32.mrb[0].mxu0
            %v1549 = vadd.f32 0.0, %v1548
            %v1550 = vpop.f32.mrb[0].mxu0
            %v1551 = vpop.f32.mrb[0].mxu0
            %v1552 = vadd.f32 0.0, %v1551
            %v1553 = vpop.f32.mrb[0].mxu0
            %1554 = vmatprep.mubr.bf16.mxu0 0
            %1555 = vmatmul.mubr.bf16.gmra.mrb[0].mxu0 %v1425
            %v1556 = vpop.f32.mrb[0].mxu0
            %v1557 = vadd.f32 0.0, %v1556
            %v1558 = vpop.f32.mrb[0].mxu0
            %v1559 = vpop.f32.mrb[0].mxu0
            %v1560 = vadd.f32 0.0, %v1559
            %v1561 = vpop.f32.mrb[0].mxu0
            %1562 = vmatprep.mubr.bf16.mxu0 0
            %1563 = vmatmul.mubr.bf16.gmra.mrb[0].mxu0 %v1426
            %v1564 = vpop.f32.mrb[0].mxu0
            %v1565 = vadd.f32 0.0, %v1564
            %v1566 = vpop.f32.mrb[0].mxu0
            %v1567 = vpop.f32.mrb[0].mxu0
            %v1568 = vadd.f32 0.0, %v1567
            %v1569 = vpop.f32.mrb[0].mxu0
            %1570 = vmatprep.mubr.bf16.mxu0 0
            %1571 = vmatmul.mubr.bf16.gmra.mrb[0].mxu0 %v1427
            %v1572 = vpop.f32.mrb[0].mxu0
            %v1573 = vadd.f32 0.0, %v1572
            %v1574 = vpop.f32.mrb[0].mxu0
            %v1575 = vpop.f32.mrb[0].mxu0
            %v1576 = vadd.f32 0.0, %v1575
            %v1577 = vpop.f32.mrb[0].mxu0
            %1578 = vmatprep.mubr.bf16.mxu0 0
            %1579 = vmatmul.mubr.bf16.gmra.mrb[0].mxu0 %v1428
            %v1580 = vpop.f32.mrb[0].mxu0
            %v1581 = vadd.f32 0.0, %v1580
            %v1582 = vpop.f32.mrb[0].mxu0
            %v1583 = vpop.f32.mrb[0].mxu0
            %v1584 = vadd.f32 0.0, %v1583
            %v1585 = vpop.f32.mrb[0].mxu0
            %1586 = vmatprep.mubr.bf16.mxu0 0
            %1587 = vmatmul.mubr.bf16.gmra.mrb[0].mxu0 %v1429
            %v1588 = vpop.f32.mrb[0].mxu0
            %v1589 = vadd.f32 0.0, %v1588
            %v1590 = vpop.f32.mrb[0].mxu0
            %v1591 = vpop.f32.mrb[0].mxu0
            %v1592 = vadd.f32 0.0, %v1591
            %v1593 = vpop.f32.mrb[0].mxu0
            %1594 = vmatprep.mubr.bf16.mxu0 0
            %1595 = vmatmul.mubr.bf16.gmra.mrb[0].mxu0 %v1430
            %v1596 = vpop.f32.mrb[0].mxu0
            %v1597 = vadd.f32 0.0, %v1596
            %v1598 = vpop.f32.mrb[0].mxu0
            %v1599 = vpop.f32.mrb[0].mxu0
            %v1600 = vadd.f32 0.0, %v1599
            %v1601 = vpop.f32.mrb[0].mxu0
            %1602 = vmatprep.mubr.bf16.mxu0 0
            %1603 = vmatmul.mubr.bf16.gmra.mrb[0].mxu0 %v1431
            %v1604 = vpop.f32.mrb[0].mxu0
            %v1605 = vadd.f32 0.0, %v1604
            %v1606 = vpop.f32.mrb[0].mxu0
            %v1607 = vpop.f32.mrb[0].mxu0
            %v1608 = vadd.f32 0.0, %v1607
            %v1609 = vpop.f32.mrb[0].mxu0
            %1610 = vmatprep.mubr.bf16.mxu0 0
            %1611 = vmatmul.mubr.bf16.gmra.mrb[0].mxu0 %v1432
            %v1612 = vpop.f32.mrb[0].mxu0
            %v1613 = vadd.f32 0.0, %v1612
            %v1614 = vpop.f32.mrb[0].mxu0
            %v1615 = vpop.f32.mrb[0].mxu0
            %v1616 = vadd.f32 0.0, %v1615
            %v1617 = vpop.f32.mrb[0].mxu0
            %1618 = vmatprep.mubr.bf16.mxu0 0
            %1619 = vmatmul.mubr.bf16.gmra.mrb[0].mxu0 %v1433
            %v1620 = vpop.f32.mrb[0].mxu0
            %v1621 = vadd.f32 0.0, %v1620
            %v1622 = vpop.f32.mrb[0].mxu0
            %v1623 = vpop.f32.mrb[0].mxu0
            %v1624 = vadd.f32 0.0, %v1623
            %v1625 = vpop.f32.mrb[0].mxu0
            %1626 = vmatprep.mubr.bf16.mxu0 0
            %1627 = vmatmul.mubr.bf16.gmra.mrb[0].mxu0 %v1434
            %v1628 = vpop.f32.mrb[0].mxu0
            %v1629 = vadd.f32 0.0, %v1628
            %v1630 = vpop.f32.mrb[0].mxu0
            %v1631 = vpop.f32.mrb[0].mxu0
            %v1632 = vadd.f32 0.0, %v1631
            %v1633 = vpop.f32.mrb[0].mxu0
            %1634 = vmatprep.mubr.bf16.mxu0 0
            %1635 = vmatmul.mubr.bf16.gmra.mrb[0].mxu0 %v1435
            %v1636 = vpop.f32.mrb[0].mxu0
            %v1637 = vadd.f32 0.0, %v1636
            %v1638 = vpop.f32.mrb[0].mxu0
            %v1639 = vpop.f32.mrb[0].mxu0
            %v1640 = vadd.f32 0.0, %v1639
            %v1641 = vpop.f32.mrb[0].mxu0
            %1642 = vmatprep.mubr.bf16.mxu0 0
            %1643 = vmatmul.mubr.bf16.gmra.mrb[0].mxu0 %v1436
            %v1644 = vpop.f32.mrb[0].mxu0
            %v1645 = vadd.f32 0.0, %v1644
            %v1646 = vpop.f32.mrb[0].mxu0
            %v1647 = vpop.f32.mrb[0].mxu0
            %v1648 = vadd.f32 0.0, %v1647
            %v1649 = vpop.f32.mrb[0].mxu0
            %1650 = vmatprep.mubr.bf16.mxu0 0
            %1651 = vmatmul.mubr.bf16.gmra.mrb[0].mxu0 %v1437
            %v1652 = vpop.f32.mrb[0].mxu0
            %v1653 = vadd.f32 0.0, %v1652
            %v1654 = vpop.f32.mrb[0].mxu0
            %v1655 = vpop.f32.mrb[0].mxu0
            %v1656 = vadd.f32 0.0, %v1655
            %v1657 = vpop.f32.mrb[0].mxu0
            %1658 = vmatprep.mubr.bf16.mxu0 0
            %1659 = vmatmul.mubr.bf16.gmra.mrb[0].mxu0 %v1438
            %v1660 = vpop.f32.mrb[0].mxu0
            %v1661 = vadd.f32 0.0, %v1660
            %v1662 = vpop.f32.mrb[0].mxu0
            %v1663 = vpop.f32.mrb[0].mxu0
            %v1664 = vadd.f32 0.0, %v1663
            %v1665 = vpop.f32.mrb[0].mxu0
            %1666 = vdwg.mxu0
            %v1667 = vpack.c.bf16 %v1544, %v1541
            %v1668 = vpack.c.bf16 %v1552, %v1549
            %v1669 = vpack.c.bf16 %v1560, %v1557
            %v1670 = vpack.c.bf16 %v1568, %v1565
            %v1671 = vpack.c.bf16 %v1576, %v1573
            %v1672 = vpack.c.bf16 %v1584, %v1581
            %v1673 = vpack.c.bf16 %v1592, %v1589
            %v1674 = vpack.c.bf16 %v1600, %v1597
            %v1675 = vpack.c.bf16 %v1608, %v1605
            %v1676 = vpack.c.bf16 %v1616, %v1613
            %v1677 = vpack.c.bf16 %v1624, %v1621
            %v1678 = vpack.c.bf16 %v1632, %v1629
            %v1679 = vpack.c.bf16 %v1640, %v1637
            %v1680 = vpack.c.bf16 %v1648, %v1645
            %v1681 = vpack.c.bf16 %v1656, %v1653
            %v1682 = vpack.c.bf16 %v1664, %v1661
            %1683 = vst [vmem:[#allocation2] sm:$0xff] %v1667
            %1684 = vst [vmem:[#allocation2 + $0x8] sm:$0xff] %v1668
            %1685 = vst [vmem:[#allocation2 + $0x10] sm:$0xff] %v1669
            %1686 = vst [vmem:[#allocation2 + $0x18] sm:$0xff] %v1670
            %1687 = vst [vmem:[#allocation2 + $0x20] sm:$0xff] %v1671
            %1688 = vst [vmem:[#allocation2 + $0x28] sm:$0xff] %v1672
            %1689 = vst [vmem:[#allocation2 + $0x30] sm:$0xff] %v1673
            %1690 = vst [vmem:[#allocation2 + $0x38] sm:$0xff] %v1674
            %1691 = vst [vmem:[#allocation2 + $0x40] sm:$0xff] %v1675
            %1692 = vst [vmem:[#allocation2 + $0x48] sm:$0xff] %v1676
            %1693 = vst [vmem:[#allocation2 + $0x50] sm:$0xff] %v1677
            %1694 = vst [vmem:[#allocation2 + $0x58] sm:$0xff] %v1678
            %1695 = vst [vmem:[#allocation2 + $0x60] sm:$0xff] %v1679
            %1696 = vst [vmem:[#allocation2 + $0x68] sm:$0xff] %v1680
            %1697 = vst [vmem:[#allocation2 + $0x70] sm:$0xff] %v1681
            %1698 = vst [vmem:[#allocation2 + $0x78] sm:$0xff] %v1682
          $region92: #{tpu_custom_call.1} parent=83 // pred_fallthru
            _
          %1699 = vst [vmem:[#allocation4] sm:$0x1] 0.0
          %1700 = vst [vmem:[#allocation5] sm:$0x1] 0.0
        $region84: #{tpu_custom_call.1} parent=59 // pred_fallthru
          _
        // Predicated region
        $region93: #{tpu_custom_call.1} parent=59 // pred_check
          %p1701 = pneg %p431
        $region94: #{tpu_custom_call.1} parent=59 // pred_check_branch
          %1703 = sbr.rel (%p1701) target = $region96
        $region95: #{tpu_custom_call.1} parent=59 // pred_region
          %s1704 = smul.u32 %s32, 128
          %s1705 = sshra.s32 %s1704, 3
          %s1706 = sand.u32 %s1704, 7
          %s1707 = smul.u32 %s1705, 2
          %s1708 = smul.addr %s1707, 4
          %s1709 = scalar_lea.vmem [#allocation9], %s1708
          %v1710 = vld [vmem:[%s1709] sm:$0xff]
          %v1711 = vld [vmem:[%s1709 + $0x8] sm:$0xff]
          %v1712 = vld [vmem:[%s1709 + $0x10] sm:$0xff]
          %v1713 = vld [vmem:[%s1709 + $0x18] sm:$0xff]
          %v1714 = vld [vmem:[%s1709 + $0x20] sm:$0xff]
          %v1715 = vld [vmem:[%s1709 + $0x28] sm:$0xff]
          %v1716 = vld [vmem:[%s1709 + $0x30] sm:$0xff]
          %v1717 = vld [vmem:[%s1709 + $0x38] sm:$0xff]
          %v1718 = vld [vmem:[%s1709 + $0x40] sm:$0xff]
          %v1719 = vld [vmem:[%s1709 + $0x48] sm:$0xff]
          %v1720 = vld [vmem:[%s1709 + $0x50] sm:$0xff]
          %v1721 = vld [vmem:[%s1709 + $0x58] sm:$0xff]
          %v1722 = vld [vmem:[%s1709 + $0x60] sm:$0xff]
          %v1723 = vld [vmem:[%s1709 + $0x68] sm:$0xff]
          %v1724 = vld [vmem:[%s1709 + $0x70] sm:$0xff]
          %v1725 = vld [vmem:[%s1709 + $0x78] sm:$0xff]
          %v1726 = vld [vmem:[#allocation2] sm:$0xff]
          %v1727 = vld [vmem:[#allocation2 + $0x8] sm:$0xff]
          %v1728 = vld [vmem:[#allocation2 + $0x10] sm:$0xff]
          %v1729 = vld [vmem:[#allocation2 + $0x18] sm:$0xff]
          %v1730 = vld [vmem:[#allocation2 + $0x20] sm:$0xff]
          %v1731 = vld [vmem:[#allocation2 + $0x28] sm:$0xff]
          %v1732 = vld [vmem:[#allocation2 + $0x30] sm:$0xff]
          %v1733 = vld [vmem:[#allocation2 + $0x38] sm:$0xff]
          %v1734 = vld [vmem:[#allocation2 + $0x40] sm:$0xff]
          %v1735 = vld [vmem:[#allocation2 + $0x48] sm:$0xff]
          %v1736 = vld [vmem:[#allocation2 + $0x50] sm:$0xff]
          %v1737 = vld [vmem:[#allocation2 + $0x58] sm:$0xff]
          %v1738 = vld [vmem:[#allocation2 + $0x60] sm:$0xff]
          %v1739 = vld [vmem:[#allocation2 + $0x68] sm:$0xff]
          %v1740 = vld [vmem:[#allocation2 + $0x70] sm:$0xff]
          %v1741 = vld [vmem:[#allocation2 + $0x78] sm:$0xff]
          %v1758 = vunpack.c.l.b16 %v1710
          %v1759 = vunpack.c.h.b16 %v1710
          %v1760 = vunpack.c.l.b16 %v1711
          %v1761 = vunpack.c.h.b16 %v1711
          %v1762 = vunpack.c.l.b16 %v1712
          %v1763 = vunpack.c.h.b16 %v1712
          %v1764 = vunpack.c.l.b16 %v1713
          %v1765 = vunpack.c.h.b16 %v1713
          %v1766 = vunpack.c.l.b16 %v1714
          %v1767 = vunpack.c.h.b16 %v1714
          %v1768 = vunpack.c.l.b16 %v1715
          %v1769 = vunpack.c.h.b16 %v1715
          %v1770 = vunpack.c.l.b16 %v1716
          %v1771 = vunpack.c.h.b16 %v1716
          %v1772 = vunpack.c.l.b16 %v1717
          %v1773 = vunpack.c.h.b16 %v1717
          %v1774 = vunpack.c.l.b16 %v1718
          %v1775 = vunpack.c.h.b16 %v1718
          %v1776 = vunpack.c.l.b16 %v1719
          %v1777 = vunpack.c.h.b16 %v1719
          %v1778 = vunpack.c.l.b16 %v1720
          %v1779 = vunpack.c.h.b16 %v1720
          %v1780 = vunpack.c.l.b16 %v1721
          %v1781 = vunpack.c.h.b16 %v1721
          %v1782 = vunpack.c.l.b16 %v1722
          %v1783 = vunpack.c.h.b16 %v1722
          %v1784 = vunpack.c.l.b16 %v1723
          %v1785 = vunpack.c.h.b16 %v1723
          %v1786 = vunpack.c.l.b16 %v1724
          %v1787 = vunpack.c.h.b16 %v1724
          %v1788 = vunpack.c.l.b16 %v1725
          %v1789 = vunpack.c.h.b16 %v1725
          %v1790 = vpack.c.b16 %v1760, %v1758
          %v1791 = vpack.c.b16 %v1761, %v1759
          %v1792 = vpack.c.b16 %v1764, %v1762
          %v1793 = vpack.c.b16 %v1765, %v1763
          %v1794 = vpack.c.b16 %v1768, %v1766
          %v1795 = vpack.c.b16 %v1769, %v1767
          %v1796 = vpack.c.b16 %v1772, %v1770
          %v1797 = vpack.c.b16 %v1773, %v1771
          %v1798 = vpack.c.b16 %v1776, %v1774
          %v1799 = vpack.c.b16 %v1777, %v1775
          %v1800 = vpack.c.b16 %v1780, %v1778
          %v1801 = vpack.c.b16 %v1781, %v1779
          %v1802 = vpack.c.b16 %v1784, %v1782
          %v1803 = vpack.c.b16 %v1785, %v1783
          %v1804 = vpack.c.b16 %v1788, %v1786
          %v1805 = vpack.c.b16 %v1789, %v1787
          %1822 = vmatprep.subr.bf16.mxu0 0
          %1823 = vmatpush1.bf16.msra.mxu0 %v1726
          %1824 = vmatprep.subr.bf16.mxu0 0
          %1825 = vmatpush1.bf16.msra.mxu0 %v1727
          %1826 = vmatprep.subr.bf16.mxu0 0
          %1827 = vmatpush1.bf16.msra.mxu0 %v1728
          %1828 = vmatprep.subr.bf16.mxu0 0
          %1829 = vmatpush1.bf16.msra.mxu0 %v1729
          %1830 = vmatprep.subr.bf16.mxu0 0
          %1831 = vmatpush1.bf16.msra.mxu0 %v1730
          %1832 = vmatprep.subr.bf16.mxu0 0
          %1833 = vmatpush1.bf16.msra.mxu0 %v1731
          %1834 = vmatprep.subr.bf16.mxu0 0
          %1835 = vmatpush1.bf16.msra.mxu0 %v1732
          %1836 = vmatprep.subr.bf16.mxu0 0
          %1837 = vmatpush1.bf16.msra.mxu0 %v1733
          %1838 = vmatprep.subr.bf16.mxu0 0
          %1839 = vmatpush1.bf16.msra.mxu0 %v1734
          %1840 = vmatprep.subr.bf16.mxu0 0
          %1841 = vmatpush1.bf16.msra.mxu0 %v1735
          %1842 = vmatprep.subr.bf16.mxu0 0
          %1843 = vmatpush1.bf16.msra.mxu0 %v1736
          %1844 = vmatprep.subr.bf16.mxu0 0
          %1845 = vmatpush1.bf16.msra.mxu0 %v1737
          %1846 = vmatprep.subr.bf16.mxu0 0
          %1847 = vmatpush1.bf16.msra.mxu0 %v1738
          %1848 = vmatprep.subr.bf16.mxu0 0
          %1849 = vmatpush1.bf16.msra.mxu0 %v1739
          %1850 = vmatprep.subr.bf16.mxu0 0
          %1851 = vmatpush1.bf16.msra.mxu0 %v1740
          %1852 = vmatprep.subr.bf16.mxu0 0
          %1853 = vmatpush1.bf16.msra.mxu0 %v1741
          %1854 = vmatprep.mubr.bf16.mxu0 %v1791
          %1855 = vmatmul.mubr.bf16.gmra.mrb[0].mxu0 %v1790
          %v1856 = vpop.f32.mrb[0].mxu0
          %v1857 = vadd.f32 0.0, %v1856
          %v1858 = vpop.f32.mrb[0].mxu0
          %v1859 = vpop.f32.mrb[0].mxu0
          %v1860 = vadd.f32 0.0, %v1859
          %v1861 = vpop.f32.mrb[0].mxu0
          %1862 = vmatprep.mubr.bf16.mxu0 %v1793
          %1863 = vmatmul.mubr.bf16.gmra.mrb[0].mxu0 %v1792
          %v1864 = vpop.f32.mrb[0].mxu0
          %v1865 = vadd.f32 0.0, %v1864
          %v1866 = vpop.f32.mrb[0].mxu0
          %v1867 = vpop.f32.mrb[0].mxu0
          %v1868 = vadd.f32 0.0, %v1867
          %v1869 = vpop.f32.mrb[0].mxu0
          %1870 = vmatprep.mubr.bf16.mxu0 %v1795
          %1871 = vmatmul.mubr.bf16.gmra.mrb[0].mxu0 %v1794
          %v1872 = vpop.f32.mrb[0].mxu0
          %v1873 = vadd.f32 0.0, %v1872
          %v1874 = vpop.f32.mrb[0].mxu0
          %v1875 = vpop.f32.mrb[0].mxu0
          %v1876 = vadd.f32 0.0, %v1875
          %v1877 = vpop.f32.mrb[0].mxu0
          %1878 = vmatprep.mubr.bf16.mxu0 %v1797
          %1879 = vmatmul.mubr.bf16.gmra.mrb[0].mxu0 %v1796
          %v1880 = vpop.f32.mrb[0].mxu0
          %v1881 = vadd.f32 0.0, %v1880
          %v1882 = vpop.f32.mrb[0].mxu0
          %v1883 = vpop.f32.mrb[0].mxu0
          %v1884 = vadd.f32 0.0, %v1883
          %v1885 = vpop.f32.mrb[0].mxu0
          %1886 = vmatprep.mubr.bf16.mxu0 %v1799
          %1887 = vmatmul.mubr.bf16.gmra.mrb[0].mxu0 %v1798
          %v1888 = vpop.f32.mrb[0].mxu0
          %v1889 = vadd.f32 0.0, %v1888
          %v1890 = vpop.f32.mrb[0].mxu0
          %v1891 = vpop.f32.mrb[0].mxu0
          %v1892 = vadd.f32 0.0, %v1891
          %v1893 = vpop.f32.mrb[0].mxu0
          %1894 = vmatprep.mubr.bf16.mxu0 %v1801
          %1895 = vmatmul.mubr.bf16.gmra.mrb[0].mxu0 %v1800
          %v1896 = vpop.f32.mrb[0].mxu0
          %v1897 = vadd.f32 0.0, %v1896
          %v1898 = vpop.f32.mrb[0].mxu0
          %v1899 = vpop.f32.mrb[0].mxu0
          %v1900 = vadd.f32 0.0, %v1899
          %v1901 = vpop.f32.mrb[0].mxu0
          %1902 = vmatprep.mubr.bf16.mxu0 %v1803
          %1903 = vmatmul.mubr.bf16.gmra.mrb[0].mxu0 %v1802
          %v1904 = vpop.f32.mrb[0].mxu0
          %v1905 = vadd.f32 0.0, %v1904
          %v1906 = vpop.f32.mrb[0].mxu0
          %v1907 = vpop.f32.mrb[0].mxu0
          %v1908 = vadd.f32 0.0, %v1907
          %v1909 = vpop.f32.mrb[0].mxu0
          %1910 = vmatprep.mubr.bf16.mxu0 %v1805
          %1911 = vmatmul.mubr.bf16.gmra.mrb[0].mxu0 %v1804
          %v1912 = vpop.f32.mrb[0].mxu0
          %v1913 = vadd.f32 0.0, %v1912
          %v1914 = vpop.f32.mrb[0].mxu0
          %v1915 = vpop.f32.mrb[0].mxu0
          %v1916 = vadd.f32 0.0, %v1915
          %v1917 = vpop.f32.mrb[0].mxu0
          %1918 = vdwg.mxu0
          %s1919 = scalar_lea.vmem [#allocation3], %s1704
          %1920 = vst [vmem:[%s1919] sm:$0xff] %v1857
          %1921 = vst [vmem:[%s1919 + $0x8] sm:$0xff] %v1860
          %1922 = vst [vmem:[%s1919 + $0x10] sm:$0xff] %v1865
          %1923 = vst [vmem:[%s1919 + $0x18] sm:$0xff] %v1868
          %1924 = vst [vmem:[%s1919 + $0x20] sm:$0xff] %v1873
          %1925 = vst [vmem:[%s1919 + $0x28] sm:$0xff] %v1876
          %1926 = vst [vmem:[%s1919 + $0x30] sm:$0xff] %v1881
          %1927 = vst [vmem:[%s1919 + $0x38] sm:$0xff] %v1884
          %1928 = vst [vmem:[%s1919 + $0x40] sm:$0xff] %v1889
          %1929 = vst [vmem:[%s1919 + $0x48] sm:$0xff] %v1892
          %1930 = vst [vmem:[%s1919 + $0x50] sm:$0xff] %v1897
          %1931 = vst [vmem:[%s1919 + $0x58] sm:$0xff] %v1900
          %1932 = vst [vmem:[%s1919 + $0x60] sm:$0xff] %v1905
          %1933 = vst [vmem:[%s1919 + $0x68] sm:$0xff] %v1908
          %1934 = vst [vmem:[%s1919 + $0x70] sm:$0xff] %v1913
          %1935 = vst [vmem:[%s1919 + $0x78] sm:$0xff] %v1916
          %v1936 = vld [vmem:[#allocation4] sm:$0x1]
          %v1937 = vadd.f32 %v1857, %v1860
          %v1938 = vadd.f32 %v1937, %v1865
          %v1939 = vadd.f32 %v1938, %v1868
          %v1940 = vadd.f32 %v1939, %v1873
          %v1941 = vadd.f32 %v1940, %v1876
          %v1942 = vadd.f32 %v1941, %v1881
          %v1943 = vadd.f32 %v1942, %v1884
          %v1944 = vadd.f32 %v1943, %v1889
          %v1945 = vadd.f32 %v1944, %v1892
          %v1946 = vadd.f32 %v1945, %v1897
          %v1947 = vadd.f32 %v1946, %v1900
          %v1948 = vadd.f32 %v1947, %v1905
          %v1949 = vadd.f32 %v1948, %v1908
          %v1950 = vadd.f32 %v1949, %v1913
          %v1951 = vadd.f32 %v1950, %v1916
          %v1952 = vrot.slane %v1951, 4
          %v1953 = vadd.f32 %v1951, %v1952
          %v1954 = vrot.slane %v1953, 2
          %v1955 = vadd.f32 %v1953, %v1954
          %v1956 = vrot.slane %v1955, 1
          %v1957 = vadd.f32 %v1955, %v1956
          %v1958 = vadd.f32 %v1936, %v1957
          %1959 = vst [vmem:[#allocation4] sm:$0x1] %v1958
          %v1960 = vld [vmem:[#allocation5] sm:$0x1]
          %v1961 = vmul.f32 %v1857, %v1857
          %v1962 = vmul.f32 %v1860, %v1860
          %v1963 = vmul.f32 %v1865, %v1865
          %v1964 = vmul.f32 %v1868, %v1868
          %v1965 = vmul.f32 %v1873, %v1873
          %v1966 = vmul.f32 %v1876, %v1876
          %v1967 = vmul.f32 %v1881, %v1881
          %v1968 = vmul.f32 %v1884, %v1884
          %v1969 = vmul.f32 %v1889, %v1889
          %v1970 = vmul.f32 %v1892, %v1892
          %v1971 = vmul.f32 %v1897, %v1897
          %v1972 = vmul.f32 %v1900, %v1900
          %v1973 = vmul.f32 %v1905, %v1905
          %v1974 = vmul.f32 %v1908, %v1908
          %v1975 = vmul.f32 %v1913, %v1913
          %v1976 = vmul.f32 %v1916, %v1916
          %v1977 = vadd.f32 %v1961, %v1962
          %v1978 = vadd.f32 %v1977, %v1963
          %v1979 = vadd.f32 %v1978, %v1964
          %v1980 = vadd.f32 %v1979, %v1965
          %v1981 = vadd.f32 %v1980, %v1966
          %v1982 = vadd.f32 %v1981, %v1967
          %v1983 = vadd.f32 %v1982, %v1968
          %v1984 = vadd.f32 %v1983, %v1969
          %v1985 = vadd.f32 %v1984, %v1970
          %v1986 = vadd.f32 %v1985, %v1971
          %v1987 = vadd.f32 %v1986, %v1972
          %v1988 = vadd.f32 %v1987, %v1973
          %v1989 = vadd.f32 %v1988, %v1974
          %v1990 = vadd.f32 %v1989, %v1975
          %v1991 = vadd.f32 %v1990, %v1976
          %v1992 = vrot.slane %v1991, 4
          %v1993 = vadd.f32 %v1991, %v1992
          %v1994 = vrot.slane %v1993, 2
          %v1995 = vadd.f32 %v1993, %v1994
          %v1996 = vrot.slane %v1995, 1
          %v1997 = vadd.f32 %v1995, %v1996
          %v1998 = vadd.f32 %v1960, %v1997
          %1999 = vst [vmem:[#allocation5] sm:$0x1] %v1998
        $region96: #{tpu_custom_call.1} parent=59 // pred_fallthru
          _
        %p2000 = scmp.eq.s32.totalorder %s31, 2
        // Predicated region
        $region97: #{tpu_custom_call.1} parent=59 // pred_check
          %p2001 = pneg %p2000
        $region98: #{tpu_custom_call.1} parent=59 // pred_check_branch
          %2003 = sbr.rel (%p2001) target = $region100
        $region99: #{tpu_custom_call.1} parent=59 // pred_region
          %s2004 = smul.u32 %s32, 128
          %v2005 = vld [vmem:[#allocation4] sm:$0x1]
          %v2006 = vld [vmem:[#allocation5] sm:$0x1]
          %s2007 = scalar_lea.vmem %s6, 1
          %v2008 = vld [vmem:[%s2007] sm:$0x1]
          %s2009 = scalar_lea.vmem %s7, 1
          %v2010 = vld [vmem:[%s2009] sm:$0x1]
          %v2011 = vmul.f32 %v2005, 0.005
          %v2012 = vmul.f32 %v2006, 0.005
          %v2013 = vmul.f32 %v2011, %v2011
          %v2014 = vsub.f32 %v2012, %v2013
          %v2015 = vmax.f32 %v2014, 0.0
          %v2016 = vadd.f32 %v2015, 1e-05
          %v2017 = vrsqrt.pop %v2016
          %v2018 = vmul.f32 %v2017, %v2008
          %v2019 = vmul.f32 %v2011, %v2018
          %v2020 = vsub.f32 %v2010, %v2019
          %s2021 = scalar_lea.vmem [#allocation3], %s2004
          %v2022 = vld [vmem:[%s2021] sm:$0xff]
          %v2023 = vld [vmem:[%s2021 + $0x8] sm:$0xff]
          %v2024 = vld [vmem:[%s2021 + $0x10] sm:$0xff]
          %v2025 = vld [vmem:[%s2021 + $0x18] sm:$0xff]
          %v2026 = vld [vmem:[%s2021 + $0x20] sm:$0xff]
          %v2027 = vld [vmem:[%s2021 + $0x28] sm:$0xff]
          %v2028 = vld [vmem:[%s2021 + $0x30] sm:$0xff]
          %v2029 = vld [vmem:[%s2021 + $0x38] sm:$0xff]
          %v2030 = vld [vmem:[%s2021 + $0x40] sm:$0xff]
          %v2031 = vld [vmem:[%s2021 + $0x48] sm:$0xff]
          %v2032 = vld [vmem:[%s2021 + $0x50] sm:$0xff]
          %v2033 = vld [vmem:[%s2021 + $0x58] sm:$0xff]
          %v2034 = vld [vmem:[%s2021 + $0x60] sm:$0xff]
          %v2035 = vld [vmem:[%s2021 + $0x68] sm:$0xff]
          %v2036 = vld [vmem:[%s2021 + $0x70] sm:$0xff]
          %v2037 = vld [vmem:[%s2021 + $0x78] sm:$0xff]
          %v2039 = vlaneseq
          %v2040 = vshrl.u32 %v2039, 7
          %v2041 = vsub.s32 0, %v2040
          %v2042 = vrot.slane %v2018, %v2041
          %v2044 = vmul.f32 %v2022, %v2042
          %v2045 = vmul.f32 %v2023, %v2042
          %v2046 = vmul.f32 %v2024, %v2042
          %v2047 = vmul.f32 %v2025, %v2042
          %v2048 = vmul.f32 %v2026, %v2042
          %v2049 = vmul.f32 %v2027, %v2042
          %v2050 = vmul.f32 %v2028, %v2042
          %v2051 = vmul.f32 %v2029, %v2042
          %v2052 = vmul.f32 %v2030, %v2042
          %v2053 = vmul.f32 %v2031, %v2042
          %v2054 = vmul.f32 %v2032, %v2042
          %v2055 = vmul.f32 %v2033, %v2042
          %v2056 = vmul.f32 %v2034, %v2042
          %v2057 = vmul.f32 %v2035, %v2042
          %v2058 = vmul.f32 %v2036, %v2042
          %v2059 = vmul.f32 %v2037, %v2042
          %v2061 = vlaneseq
          %v2062 = vshrl.u32 %v2061, 7
          %v2063 = vsub.s32 0, %v2062
          %v2064 = vrot.slane %v2020, %v2063
          %v2066 = vadd.f32 %v2044, %v2064
          %v2067 = vadd.f32 %v2045, %v2064
          %v2068 = vadd.f32 %v2046, %v2064
          %v2069 = vadd.f32 %v2047, %v2064
          %v2070 = vadd.f32 %v2048, %v2064
          %v2071 = vadd.f32 %v2049, %v2064
          %v2072 = vadd.f32 %v2050, %v2064
          %v2073 = vadd.f32 %v2051, %v2064
          %v2074 = vadd.f32 %v2052, %v2064
          %v2075 = vadd.f32 %v2053, %v2064
          %v2076 = vadd.f32 %v2054, %v2064
          %v2077 = vadd.f32 %v2055, %v2064
          %v2078 = vadd.f32 %v2056, %v2064
          %v2079 = vadd.f32 %v2057, %v2064
          %v2080 = vadd.f32 %v2058, %v2064
          %v2081 = vadd.f32 %v2059, %v2064
          %v2082 = vmax.f32 %v2066, 0.0
          %v2083 = vmax.f32 %v2067, 0.0
          %v2084 = vmax.f32 %v2068, 0.0
          %v2085 = vmax.f32 %v2069, 0.0
          %v2086 = vmax.f32 %v2070, 0.0
          %v2087 = vmax.f32 %v2071, 0.0
          %v2088 = vmax.f32 %v2072, 0.0
          %v2089 = vmax.f32 %v2073, 0.0
          %v2090 = vmax.f32 %v2074, 0.0
          %v2091 = vmax.f32 %v2075, 0.0
          %v2092 = vmax.f32 %v2076, 0.0
          %v2093 = vmax.f32 %v2077, 0.0
          %v2094 = vmax.f32 %v2078, 0.0
          %v2095 = vmax.f32 %v2079, 0.0
          %v2096 = vmax.f32 %v2080, 0.0
          %v2097 = vmax.f32 %v2081, 0.0
          %v2098 = vpack.c.bf16 %v2083, %v2082
          %v2099 = vpack.c.bf16 %v2085, %v2084
          %v2100 = vpack.c.bf16 %v2087, %v2086
          %v2101 = vpack.c.bf16 %v2089, %v2088
          %v2102 = vpack.c.bf16 %v2091, %v2090
          %v2103 = vpack.c.bf16 %v2093, %v2092
          %v2104 = vpack.c.bf16 %v2095, %v2094
          %v2105 = vpack.c.bf16 %v2097, %v2096
          %v2106 = vld [vmem:[#allocation14] sm:$0xf]
          %v2107 = vld [vmem:[#allocation14 + $0x4] sm:$0xf]
          %v2108 = vld [vmem:[#allocation14 + $0x8] sm:$0xf]
          %v2109 = vld [vmem:[#allocation14 + $0xc] sm:$0xf]
          %v2110 = vld [vmem:[#allocation14 + $0x10] sm:$0xf]
          %v2111 = vld [vmem:[#allocation14 + $0x14] sm:$0xf]
          %v2112 = vld [vmem:[#allocation14 + $0x18] sm:$0xf]
          %v2113 = vld [vmem:[#allocation14 + $0x1c] sm:$0xf]
          %v2114 = vld [vmem:[#allocation14 + $0x20] sm:$0xf]
          %v2115 = vld [vmem:[#allocation14 + $0x24] sm:$0xf]
          %v2116 = vld [vmem:[#allocation14 + $0x28] sm:$0xf]
          %v2117 = vld [vmem:[#allocation14 + $0x2c] sm:$0xf]
          %v2118 = vld [vmem:[#allocation14 + $0x30] sm:$0xf]
          %v2119 = vld [vmem:[#allocation14 + $0x34] sm:$0xf]
          %v2120 = vld [vmem:[#allocation14 + $0x38] sm:$0xf]
          %v2121 = vld [vmem:[#allocation14 + $0x3c] sm:$0xf]
          %v2122 = vld [vmem:[%s9] sm:$0x1]
          %v2124 = vlaneseq
          %v2125 = vshrl.u32 %v2124, 7
          %v2126 = vsub.s32 0, %v2125
          %v2127 = vrot.slane %v2122, %v2126
          %v2145 = vunpack.c.l.b16 %v2106
          %v2146 = vunpack.c.l.b16 %v2107
          %v2147 = vunpack.c.l.b16 %v2108
          %v2148 = vunpack.c.l.b16 %v2109
          %v2149 = vunpack.c.l.b16 %v2110
          %v2150 = vunpack.c.l.b16 %v2111
          %v2151 = vunpack.c.l.b16 %v2112
          %v2152 = vunpack.c.l.b16 %v2113
          %v2153 = vunpack.c.l.b16 %v2114
          %v2154 = vunpack.c.l.b16 %v2115
          %v2155 = vunpack.c.l.b16 %v2116
          %v2156 = vunpack.c.l.b16 %v2117
          %v2157 = vunpack.c.l.b16 %v2118
          %v2158 = vunpack.c.l.b16 %v2119
          %v2159 = vunpack.c.l.b16 %v2120
          %v2160 = vunpack.c.l.b16 %v2121
          %v2161 = vpack.c.b16 %v2146, %v2145
          %v2162 = vpack.c.b16 %v2148, %v2147
          %v2163 = vpack.c.b16 %v2150, %v2149
          %v2164 = vpack.c.b16 %v2152, %v2151
          %v2165 = vpack.c.b16 %v2154, %v2153
          %v2166 = vpack.c.b16 %v2156, %v2155
          %v2167 = vpack.c.b16 %v2158, %v2157
          %v2168 = vpack.c.b16 %v2160, %v2159
          %2177 = vmatprep.subr.bf16.mxu0 0
          %2178 = vmatpush1.bf16.msra.mxu0 %v2161
          %2179 = vmatprep.subr.bf16.mxu0 0
          %2180 = vmatpush1.bf16.msra.mxu0 %v2162
          %2181 = vmatprep.subr.bf16.mxu0 0
          %2182 = vmatpush1.bf16.msra.mxu0 %v2163
          %2183 = vmatprep.subr.bf16.mxu0 0
          %2184 = vmatpush1.bf16.msra.mxu0 %v2164
          %2185 = vmatprep.subr.bf16.mxu0 0
          %2186 = vmatpush1.bf16.msra.mxu0 %v2165
          %2187 = vmatprep.subr.bf16.mxu0 0
          %2188 = vmatpush1.bf16.msra.mxu0 %v2166
          %2189 = vmatprep.subr.bf16.mxu0 0
          %2190 = vmatpush1.bf16.msra.mxu0 %v2167
          %2191 = vmatprep.subr.bf16.mxu0 0
          %2192 = vmatpush1.bf16.msra.mxu0 %v2168
          %2193 = vmatprep.subr.bf16.mxu0 0
          %2194 = vmatpush1.bf16.msra.mxu0 0
          %2195 = vmatprep.subr.bf16.mxu0 0
          %2196 = vmatpush1.bf16.msra.mxu0 0
          %2197 = vmatprep.subr.bf16.mxu0 0
          %2198 = vmatpush1.bf16.msra.mxu0 0
          %2199 = vmatprep.subr.bf16.mxu0 0
          %2200 = vmatpush1.bf16.msra.mxu0 0
          %2201 = vmatprep.subr.bf16.mxu0 0
          %2202 = vmatpush1.bf16.msra.mxu0 0
          %2203 = vmatprep.subr.bf16.mxu0 0
          %2204 = vmatpush1.bf16.msra.mxu0 0
          %2205 = vmatprep.subr.bf16.mxu0 0
          %2206 = vmatpush1.bf16.msra.mxu0 0
          %2207 = vmatprep.subr.bf16.mxu0 0
          %2208 = vmatpush1.bf16.msra.mxu0 0
          %2209 = vmatprep.mubr.bf16.mxu0 0
          %2210 = vmatmul.mubr.bf16.gmra.mrb[0].mxu0 %v2098
          %v2211 = vpop.f32.mrb[0].mxu0
          %v2212 = vadd.f32 %v2127, %v2211
          %v2213 = vpop.f32.mrb[0].mxu0
          %v2214 = vpop.f32.mrb[0].mxu0
          %v2215 = vadd.f32 %v2127, %v2214
          %v2216 = vpop.f32.mrb[0].mxu0
          %2217 = vmatprep.mubr.bf16.mxu0 0
          %2218 = vmatmul.mubr.bf16.gmra.mrb[0].mxu0 %v2099
          %v2219 = vpop.f32.mrb[0].mxu0
          %v2220 = vadd.f32 %v2127, %v2219
          %v2221 = vpop.f32.mrb[0].mxu0
          %v2222 = vpop.f32.mrb[0].mxu0
          %v2223 = vadd.f32 %v2127, %v2222
          %v2224 = vpop.f32.mrb[0].mxu0
          %2225 = vmatprep.mubr.bf16.mxu0 0
          %2226 = vmatmul.mubr.bf16.gmra.mrb[0].mxu0 %v2100
          %v2227 = vpop.f32.mrb[0].mxu0
          %v2228 = vadd.f32 %v2127, %v2227
          %v2229 = vpop.f32.mrb[0].mxu0
          %v2230 = vpop.f32.mrb[0].mxu0
          %v2231 = vadd.f32 %v2127, %v2230
          %v2232 = vpop.f32.mrb[0].mxu0
          %2233 = vmatprep.mubr.bf16.mxu0 0
          %2234 = vmatmul.mubr.bf16.gmra.mrb[0].mxu0 %v2101
          %v2235 = vpop.f32.mrb[0].mxu0
          %v2236 = vadd.f32 %v2127, %v2235
          %v2237 = vpop.f32.mrb[0].mxu0
          %v2238 = vpop.f32.mrb[0].mxu0
          %v2239 = vadd.f32 %v2127, %v2238
          %v2240 = vpop.f32.mrb[0].mxu0
          %2241 = vmatprep.mubr.bf16.mxu0 0
          %2242 = vmatmul.mubr.bf16.gmra.mrb[0].mxu0 %v2102
          %v2243 = vpop.f32.mrb[0].mxu0
          %v2244 = vadd.f32 %v2127, %v2243
          %v2245 = vpop.f32.mrb[0].mxu0
          %v2246 = vpop.f32.mrb[0].mxu0
          %v2247 = vadd.f32 %v2127, %v2246
          %v2248 = vpop.f32.mrb[0].mxu0
          %2249 = vmatprep.mubr.bf16.mxu0 0
          %2250 = vmatmul.mubr.bf16.gmra.mrb[0].mxu0 %v2103
          %v2251 = vpop.f32.mrb[0].mxu0
          %v2252 = vadd.f32 %v2127, %v2251
          %v2253 = vpop.f32.mrb[0].mxu0
          %v2254 = vpop.f32.mrb[0].mxu0
          %v2255 = vadd.f32 %v2127, %v2254
          %v2256 = vpop.f32.mrb[0].mxu0
          %2257 = vmatprep.mubr.bf16.mxu0 0
          %2258 = vmatmul.mubr.bf16.gmra.mrb[0].mxu0 %v2104
          %v2259 = vpop.f32.mrb[0].mxu0
          %v2260 = vadd.f32 %v2127, %v2259
          %v2261 = vpop.f32.mrb[0].mxu0
          %v2262 = vpop.f32.mrb[0].mxu0
          %v2263 = vadd.f32 %v2127, %v2262
          %v2264 = vpop.f32.mrb[0].mxu0
          %2265 = vmatprep.mubr.bf16.mxu0 0
          %2266 = vmatmul.mubr.bf16.gmra.mrb[0].mxu0 %v2105
          %v2267 = vpop.f32.mrb[0].mxu0
          %v2268 = vadd.f32 %v2127, %v2267
          %v2269 = vpop.f32.mrb[0].mxu0
          %v2270 = vpop.f32.mrb[0].mxu0
          %v2271 = vadd.f32 %v2127, %v2270
          %v2272 = vpop.f32.mrb[0].mxu0
          %2273 = vdwg.mxu0
          %2274 = vst [vmem:[%s426] sm:$0xff] %v2212
          %2275 = vst [vmem:[%s426 + $0x8] sm:$0xff] %v2215
          %2276 = vst [vmem:[%s426 + $0x10] sm:$0xff] %v2220
          %2277 = vst [vmem:[%s426 + $0x18] sm:$0xff] %v2223
          %2278 = vst [vmem:[%s426 + $0x20] sm:$0xff] %v2228
          %2279 = vst [vmem:[%s426 + $0x28] sm:$0xff] %v2231
          %2280 = vst [vmem:[%s426 + $0x30] sm:$0xff] %v2236
          %2281 = vst [vmem:[%s426 + $0x38] sm:$0xff] %v2239
          %2282 = vst [vmem:[%s426 + $0x40] sm:$0xff] %v2244
          %2283 = vst [vmem:[%s426 + $0x48] sm:$0xff] %v2247
          %2284 = vst [vmem:[%s426 + $0x50] sm:$0xff] %v2252
          %2285 = vst [vmem:[%s426 + $0x58] sm:$0xff] %v2255
          %2286 = vst [vmem:[%s426 + $0x60] sm:$0xff] %v2260
          %2287 = vst [vmem:[%s426 + $0x68] sm:$0xff] %v2263
          %2288 = vst [vmem:[%s426 + $0x70] sm:$0xff] %v2268
          %2289 = vst [vmem:[%s426 + $0x78] sm:$0xff] %v2271
        $region100: #{tpu_custom_call.1} parent=59 // pred_fallthru
          _
        %s2290 = sand.u32 %s261, 1
        %s2291 = scalar_lea.sflag [#allocation8], %s2290
        %s2292 = sand.u32 %s261, 1
        %s2293 = smul.addr %s2292, 128
        %s2294 = scalar_lea.vmem [#allocation15], %s2293
        // Predicated region
        $region101: #{tpu_custom_call.1} parent=59 // pred_check
          %p2295 = pneg %p271
        $region102: #{tpu_custom_call.1} parent=59 // pred_check_branch
          %2297 = sbr.rel (%p2295) target = $region104
        $region103: #{tpu_custom_call.1} parent=59 // pred_region
          %p2298 = scmp.eq.s32.totalorder %s31, 2
          %s2299 = scalar_select %p2298, %s32, 0
          %s2300 = smul.u32 16, %s2299
          %s2302 = ssub.s32 2048, 2048
          %2303 = vsyncadd %s2291, %s2302
          %s2304 = smul.addr %s2300, 128
          %s2305 = scalar_lea.hbm %s10, %s2304
          %s2306 = sshll.u32 %s2294, 4
          %s2307 = int_to_ptr.vmem [resolvable:$true] %s2306
          %2312 = dma.vmem_to_hbm [thread:$0]  %s2307, 2048, %s2305, %s2291, 128, 128, 8
        $region104: #{tpu_custom_call.1} parent=59 // pred_fallthru
          _
      $region60: #{tpu_custom_call.1} parent=5 // pred_fallthru
        _
      %p2313 = scmp.le.s32.totalorder 2, %s22
      // Predicated region
      $region105: #{tpu_custom_call.1} parent=5 // pred_check
        %p2314 = pneg %p2313
      $region106: #{tpu_custom_call.1} parent=5 // pred_check_branch
        %2316 = sbr.rel (%p2314) target = $region108
      $region107: #{tpu_custom_call.1} parent=5 // pred_region
        %s2317 = ssub.s32 %s22, 2
        // Predicated region
        $region109: #{tpu_custom_call.1} parent=107 // pred_check
          %p2318 = pneg %p277
        $region110: #{tpu_custom_call.1} parent=107 // pred_check_branch
          %2320 = sbr.rel (%p2318) target = $region112
        $region111: #{tpu_custom_call.1} parent=107 // pred_region
          %s2321 = sand.u32 %s262, 1
          %s2322 = scalar_lea.sflag [#allocation8], %s2321
          %s2323 = sand.u32 %s262, 1
          %s2324 = smul.addr %s2323, 128
          %s2325 = scalar_lea.vmem [#allocation15], %s2324
          %2326 = dma.done %s2322, 2048
        $region112: #{tpu_custom_call.1} parent=107 // pred_fallthru
          _
      $region108: #{tpu_custom_call.1} parent=5 // pred_fallthru
        _
    $region6: #{tpu_custom_call.1} parent=1 // loop_footer
      %s26 = sadd.s32 1, %s22
    $region7: #{tpu_custom_call.1} parent=1 // loop_footer_branch
      %21 = sbr.rel target = $region3
    $region8: #{tpu_custom_call.1} parent=1 // loop_exit
      _
    %2327 = vsyncpa [#allocation7], 1
    %s2328 = scalar_lea.sflag [#allocation7], 1
    %2329 = vsyncpa %s2328, 1
    %2330 = vsyncpa [#allocation10], 1
    %2331 = vsyncpa [#allocation13], 1
    %2332 = vsyncpa [#allocation8], 1
    %s2333 = scalar_lea.sflag [#allocation8], 1
    %2334 = vsyncpa %s2333, 1

</llo_original>
